<compile_context>
chip_gen: v7x
topology: tpu7x:2x2x1
jax: 0.10.0
libtpu: 0.0.40
codegen_flags: <defaults>
</compile_context>

<pallas_src>
import jax
import jax.numpy as jnp
import numpy as np
from jax.experimental import pallas as pl
from jax.experimental.pallas import tpu as pltpu

EPS = 1e-5  # nn.LayerNorm default eps


def _gelu_exact(x):
  # PyTorch nn.GELU() default is the exact (erf) formulation.
  # (jax.nn.gelu(..., approximate=True) moves work from the VALU to the otherwise-idle
  #  EUP slot if ~1e-3 deviation from torch is acceptable; kept exact here.)
  return 0.5 * x * (1.0 + jax.lax.erf(x * (2.0 ** -0.5)))


# ----------------------------------------------------------------------------
# Fused FFN kernel: one (TM, D) activation row-slab per grid step.
# ----------------------------------------------------------------------------
def _ffn_kernel(x_ref, w1_ref, b1_ref, w2_ref, b2_ref, g_ref, beta_ref, o_ref):
  x = x_ref[...]                                                      # (TM, D) f32
  # matmul 1: bf16 operands, f32 accumulation on the MXU
  h = jnp.dot(x.astype(w1_ref.dtype), w1_ref[...],
              preferred_element_type=jnp.float32)                     # (TM, F)
  h = _gelu_exact(h + b1_ref[...])                                    # f32 epilogue
  # matmul 2
  y = jnp.dot(h.astype(w2_ref.dtype), w2_ref[...],
              preferred_element_type=jnp.float32)                     # (TM, D)
  # Dropout(p=0.0) is the identity in both train and eval -> skipped.
  r = x + (y + b2_ref[...])                                           # residual, f32
  # LayerNorm with single-pass moments: var = E[r^2] - mu^2 (clamped vs cancellation).
  mu = jnp.mean(r, axis=-1, keepdims=True)
  var = jnp.maximum(jnp.mean(r * r, axis=-1, keepdims=True) - mu * mu, 0.0)
  o_ref[...] = ((r - mu) * jax.lax.rsqrt(var + EPS) * g_ref[...]
                + beta_ref[...]).astype(o_ref.dtype)


# ----------------------------------------------------------------------------
# Wrapper: tiling / VMEM budgeting / pallas_call plumbing.
# ----------------------------------------------------------------------------
def _round_up(n, m):
  return ((n + m - 1) // m) * m


def _vmem_bytes(tm, d, f, w_itemsize):
  """Conservative VMEM footprint estimate for the pipelined kernel."""
  act = 4 * tm * d          # x block (f32)
  out = 4 * tm * d          # output block (f32)
  hid = 4 * tm * f          # (TM, F) hidden (f32)
  wts = w_itemsize * 2 * d * f
  small = 4 * (2 * f + 6 * d)
  # x/out double-buffered by the pipeline; hidden x2 for elementwise temporaries;
  # weights counted x2 so the estimate also covers the non-single-buffered fallback.
  return 2 * (act + out) + 2 * hid + 2 * wts + small


def _pick_tm(m, d, f, tm_max, w_itemsize, vmem_budget):
  # >= 2 grid steps when possible so the row axis can shard across v7x's 2 TensorCores.
  tm = max(8, min(_round_up(tm_max, 8), _round_up(pl.cdiv(m, 2), 8)))
  # Shrink until the resident working set fits the VMEM budget (v7x: 64 MiB total).
  while tm > 8 and _vmem_bytes(tm, d, f, w_itemsize) > vmem_budget:
    tm = max(8, _round_up(tm // 2, 8))
  return tm


def positional_wise_feed_forward(x, params, *, tm_max=512,
                                 matmul_dtype=jnp.bfloat16,
                                 vmem_budget_bytes=48 * 1024 * 1024):
  """x: (..., model_dim). Returns LayerNorm(x + W2 @ GELU(W1 @ x + b1) + b2)."""
  d = x.shape[-1]
  f = params["w1"].shape[1]
  lead = x.shape[:-1]

  xf = x.reshape(-1, d).astype(jnp.float32)          # flatten batch*seq -> M
  m = xf.shape[0]
  # Only round rows up to the sublane multiple of 8 (<= 7 pad rows, usually 0);
  # no full-tile padding copy of the activations in HBM.
  m_pad = _round_up(max(m, 1), 8)
  if m_pad != m:
    xf = jnp.pad(xf, ((0, m_pad - m), (0, 0)))

  w_itemsize = jnp.dtype(matmul_dtype).itemsize
  tm = _pick_tm(m_pad, d, f, tm_max, w_itemsize, vmem_budget_bytes)
  grid = (pl.cdiv(m_pad, tm),)

  est = _vmem_bytes(tm, d, f, w_itemsize)
  vmem_limit = int(min(max(est + est // 4 + (1 << 20), 16 * 1024 * 1024),
                       64 * 1024 * 1024))

  # MXU operands in bf16 (resident weights at half footprint); epilogue params in f32.
  w1 = params["w1"].astype(matmul_dtype)
  w2 = params["w2"].astype(matmul_dtype)
  b1 = params["b1"].reshape(1, f).astype(jnp.float32)
  b2 = params["b2"].reshape(1, d).astype(jnp.float32)
  g = params["ln_g"].reshape(1, d).astype(jnp.float32)
  beta = params["ln_b"].reshape(1, d).astype(jnp.float32)

  def call(single_buffer_weights):
    const_kw = dict(pipeline_mode=pl.Buffered(1)) if single_buffer_weights else {}

    def const_spec(shape):
      # Same block every grid step -> stays resident in VMEM; one buffer is enough.
      return pl.BlockSpec(shape, lambda i: (0, 0), **const_kw)

    return pl.pallas_call(
        _ffn_kernel,
        grid=grid,
        in_specs=[
            pl.BlockSpec((tm, d), lambda i: (i, 0)),   # activation row slab
            const_spec((d, f)),                        # w1  (resident)
            const_spec((1, f)),                        # b1
            const_spec((f, d)),                        # w2  (resident)
            const_spec((1, d)),                        # b2
            const_spec((1, d)),                        # ln gamma
            const_spec((1, d)),                        # ln beta
        ],
        out_specs=pl.BlockSpec((tm, d), lambda i: (i, 0)),
        out_shape=jax.ShapeDtypeStruct((m_pad, d), jnp.float32),
        compiler_params=pltpu.CompilerParams(
            dimension_semantics=("parallel",),
            vmem_limit_bytes=vmem_limit),
    )(xf, w1, b1, w2, b2, g, beta)

  if hasattr(pl, "Buffered"):
    try:
      out = call(True)
    except Exception:
      # pipeline_mode=pl.Buffered(1) not accepted by this jax build: fall back to the
      # default (still resident via constant index_map, just double-buffered) specs.
      out = call(False)
  else:
    out = call(False)

  if m_pad != m:
    out = out[:m]
  return out.reshape(*lead, d).astype(x.dtype)


# ----------------------------------------------------------------------------
# deterministic parameter init (PyTorch Linear-style uniform; weights stored (in, out))
# ----------------------------------------------------------------------------
def init_params(key, model_dim, ffn_dim):
  k1, k2, k3, k4 = jax.random.split(key, 4)
  lim1 = 1.0 / (model_dim ** 0.5)
  lim2 = 1.0 / (ffn_dim ** 0.5)
  return dict(
      w1=jax.random.uniform(k1, (model_dim, ffn_dim), jnp.float32, -lim1, lim1),
      b1=jax.random.uniform(k2, (ffn_dim,), jnp.float32, -lim1, lim1),
      w2=jax.random.uniform(k3, (ffn_dim, model_dim), jnp.float32, -lim2, lim2),
      b2=jax.random.uniform(k4, (model_dim,), jnp.float32, -lim2, lim2),
      ln_g=jnp.ones((model_dim,), jnp.float32),
      ln_b=jnp.zeros((model_dim,), jnp.float32),
  )


# pure-JAX f32 reference for the correctness check
def _reference(x, p):
  h = _gelu_exact(x @ p["w1"] + p["b1"])
  y = h @ p["w2"] + p["b2"]
  r = x + y
  mu = jnp.mean(r, axis=-1, keepdims=True)
  var = jnp.mean(jnp.square(r - mu), axis=-1, keepdims=True)
  return (r - mu) * jax.lax.rsqrt(var + EPS) * p["ln_g"] + p["ln_b"]


if __name__ == "__main__":
  MODEL_DIM = 128   # lane-aligned (multiple of 128) -> unmasked vector stores
  FFN_DIM = 512
  BATCH, SEQ = 4, 8  # M = 32 rows -> tm = 16, grid = (2,) (both v7x TCs busy)

  key = jax.random.PRNGKey(0)
  kx, kp = jax.random.split(key)
  x = jax.random.normal(kx, (BATCH, SEQ, MODEL_DIM), jnp.float32)
  params = init_params(kp, MODEL_DIM, FFN_DIM)

  out = jax.block_until_ready(positional_wise_feed_forward(x, params))
  ref = jax.block_until_ready(_reference(x, params))

  assert out.shape == (BATCH, SEQ, MODEL_DIM)
  assert bool(jnp.all(jnp.isfinite(out)))
  # bf16 MXU operands with f32 accumulation: compare against the exact-f32 reference
  # with a correspondingly relaxed tolerance (LayerNorm output is O(1)).
  np.testing.assert_allclose(np.asarray(out), np.asarray(ref), rtol=2e-2, atol=3e-2)
  print("KERNEL_OK")
</pallas_src>

<mosaic_0001>
module attributes {stable_mosaic.version = 11 : i64} {
  func.func @_ffn_kernel(%arg0: i32, %arg1: memref<16x128xf32, #tpu.memory_space<vmem>>, %arg2: memref<128x512xbf16, #tpu.memory_space<vmem>>, %arg3: memref<1x512xf32, #tpu.memory_space<vmem>>, %arg4: memref<512x128xbf16, #tpu.memory_space<vmem>>, %arg5: memref<1x128xf32, #tpu.memory_space<vmem>>, %arg6: memref<1x128xf32, #tpu.memory_space<vmem>>, %arg7: memref<1x128xf32, #tpu.memory_space<vmem>>, %arg8: memref<16x128xf32, #tpu.memory_space<vmem>>) attributes {dimension_semantics = [#tpu.dimension_semantics<parallel>], iteration_bounds = array<i64: 2>, scalar_prefetch = 0 : i64, scratch_operands = 0 : i64, tpu.core_type = #tpu.core_type<tc>, window_params = [{transform_indices = @transform_0, window_bounds = array<i64: 16, 128>}, {pipeline_mode = #tpu.pipeline_mode<synchronous>, transform_indices = @transform_1, window_bounds = array<i64: 128, 512>}, {pipeline_mode = #tpu.pipeline_mode<synchronous>, transform_indices = @transform_2, window_bounds = array<i64: 1, 512>}, {pipeline_mode = #tpu.pipeline_mode<synchronous>, transform_indices = @transform_3, window_bounds = array<i64: 512, 128>}, {pipeline_mode = #tpu.pipeline_mode<synchronous>, transform_indices = @transform_4, window_bounds = array<i64: 1, 128>}, {pipeline_mode = #tpu.pipeline_mode<synchronous>, transform_indices = @transform_5, window_bounds = array<i64: 1, 128>}, {pipeline_mode = #tpu.pipeline_mode<synchronous>, transform_indices = @transform_6, window_bounds = array<i64: 1, 128>}, {transform_indices = @transform_7, window_bounds = array<i64: 16, 128>}]} {
    %c0 = arith.constant 0 : index
    %c0_0 = arith.constant 0 : index
    %0 = vector.load %arg1[%c0, %c0_0] : memref<16x128xf32, #tpu.memory_space<vmem>>, vector<16x128xf32>
    %1 = arith.truncf %0 : vector<16x128xf32> to vector<16x128xbf16>
    %c0_1 = arith.constant 0 : index
    %c0_2 = arith.constant 0 : index
    %2 = vector.load %arg2[%c0_1, %c0_2] : memref<128x512xbf16, #tpu.memory_space<vmem>>, vector<128x512xbf16>
    %cst = arith.constant dense<0.000000e+00> : vector<16x512xf32>
    %3 = tpu.matmul %1, %2, %cst {dimension_numbers = #tpu.dot_dimension_numbers<[1], [0], [0], [1], [0, 0, 1, 1], [], []>} : vector<16x128xbf16>, vector<128x512xbf16>, vector<16x512xf32> -> vector<16x512xf32>
    %c0_3 = arith.constant 0 : index
    %c0_4 = arith.constant 0 : index
    %4 = vector.load %arg3[%c0_3, %c0_4] : memref<1x512xf32, #tpu.memory_space<vmem>>, vector<1x512xf32>
    %5 = vector.broadcast %4 : vector<1x512xf32> to vector<16x512xf32>
    %6 = arith.addf %3, %5 : vector<16x512xf32>
    %cst_5 = arith.constant 5.000000e-01 : f32
    %7 = vector.broadcast %cst_5 : f32 to vector<16x512xf32>
    %8 = arith.mulf %7, %6 : vector<16x512xf32>
    %cst_6 = arith.constant 0.707106769 : f32
    %9 = vector.broadcast %cst_6 : f32 to vector<16x512xf32>
    %10 = arith.mulf %6, %9 : vector<16x512xf32>
    %11 = math.erf %10 : vector<16x512xf32>
    %cst_7 = arith.constant 1.000000e+00 : f32
    %12 = vector.broadcast %cst_7 : f32 to vector<16x512xf32>
    %13 = arith.addf %12, %11 : vector<16x512xf32>
    %14 = arith.mulf %8, %13 : vector<16x512xf32>
    %15 = arith.truncf %14 : vector<16x512xf32> to vector<16x512xbf16>
    %c0_8 = arith.constant 0 : index
    %c0_9 = arith.constant 0 : index
    %16 = vector.load %arg4[%c0_8, %c0_9] : memref<512x128xbf16, #tpu.memory_space<vmem>>, vector<512x128xbf16>
    %cst_10 = arith.constant dense<0.000000e+00> : vector<16x128xf32>
    %17 = tpu.matmul %15, %16, %cst_10 {dimension_numbers = #tpu.dot_dimension_numbers<[1], [0], [0], [1], [0, 0, 1, 1], [], []>} : vector<16x512xbf16>, vector<512x128xbf16>, vector<16x128xf32> -> vector<16x128xf32>
    %c0_11 = arith.constant 0 : index
    %c0_12 = arith.constant 0 : index
    %18 = vector.load %arg5[%c0_11, %c0_12] : memref<1x128xf32, #tpu.memory_space<vmem>>, vector<1x128xf32>
    %19 = vector.broadcast %18 : vector<1x128xf32> to vector<16x128xf32>
    %20 = arith.addf %17, %19 : vector<16x128xf32>
    %21 = arith.addf %0, %20 : vector<16x128xf32>
    %cst_13 = arith.constant dense<0.000000e+00> : vector<16xf32>
    %22 = vector.multi_reduction <add>, %21, %cst_13 [1] : vector<16x128xf32> to vector<16xf32>
    %23 = vector.shape_cast %22 : vector<16xf32> to vector<16x1xf32>
    %cst_14 = arith.constant 1.280000e+02 : f32
    %24 = vector.broadcast %cst_14 : f32 to vector<16x1xf32>
    %25 = arith.divf %23, %24 : vector<16x1xf32>
    %26 = arith.mulf %21, %21 : vector<16x128xf32>
    %cst_15 = arith.constant dense<0.000000e+00> : vector<16xf32>
    %27 = vector.multi_reduction <add>, %26, %cst_15 [1] : vector<16x128xf32> to vector<16xf32>
    %28 = vector.shape_cast %27 : vector<16xf32> to vector<16x1xf32>
    %cst_16 = arith.constant 1.280000e+02 : f32
    %29 = vector.broadcast %cst_16 : f32 to vector<16x1xf32>
    %30 = arith.divf %28, %29 : vector<16x1xf32>
    %31 = arith.mulf %25, %25 : vector<16x1xf32>
    %32 = arith.subf %30, %31 : vector<16x1xf32>
    %cst_17 = arith.constant 0.000000e+00 : f32
    %33 = vector.broadcast %cst_17 : f32 to vector<16x1xf32>
    %34 = arith.maximumf %32, %33 : vector<16x1xf32>
    %35 = vector.broadcast %25 : vector<16x1xf32> to vector<16x128xf32>
    %36 = arith.subf %21, %35 : vector<16x128xf32>
    %cst_18 = arith.constant 9.99999974E-6 : f32
    %37 = vector.broadcast %cst_18 : f32 to vector<16x1xf32>
    %38 = arith.addf %34, %37 : vector<16x1xf32>
    %39 = math.rsqrt %38 : vector<16x1xf32>
    %40 = vector.broadcast %39 : vector<16x1xf32> to vector<16x128xf32>
    %41 = arith.mulf %36, %40 : vector<16x128xf32>
    %c0_19 = arith.constant 0 : index
    %c0_20 = arith.constant 0 : index
    %42 = vector.load %arg6[%c0_19, %c0_20] : memref<1x128xf32, #tpu.memory_space<vmem>>, vector<1x128xf32>
    %43 = vector.broadcast %42 : vector<1x128xf32> to vector<16x128xf32>
    %44 = arith.mulf %41, %43 : vector<16x128xf32>
    %c0_21 = arith.constant 0 : index
    %c0_22 = arith.constant 0 : index
    %45 = vector.load %arg7[%c0_21, %c0_22] : memref<1x128xf32, #tpu.memory_space<vmem>>, vector<1x128xf32>
    %46 = vector.broadcast %45 : vector<1x128xf32> to vector<16x128xf32>
    %47 = arith.addf %44, %46 : vector<16x128xf32>
    %c0_23 = arith.constant 0 : index
    %c0_24 = arith.constant 0 : index
    %48 = vector.load %arg8[%c0_23, %c0_24] : memref<16x128xf32, #tpu.memory_space<vmem>>, vector<16x128xf32>
    tpu.vector_store %arg8[%c0_23, %c0_24], %47 {strides = array<i32>} : memref<16x128xf32, #tpu.memory_space<vmem>>, vector<16x128xf32>,
    return
  }
  func.func @transform_0(%arg0: i32) -> (i32, i32) {
    %c0_i32 = arith.constant 0 : i32
    %c0_i32_0 = arith.constant 0 : i32
    return %arg0, %c0_i32 : i32, i32
  }
  func.func @transform_1(%arg0: i32) -> (i32, i32) {
    %c0_i32 = arith.constant 0 : i32
    %c0_i32_0 = arith.constant 0 : i32
    %c0_i32_1 = arith.constant 0 : i32
    return %c0_i32, %c0_i32_0 : i32, i32
  }
  func.func @transform_2(%arg0: i32) -> (i32, i32) {
    %c0_i32 = arith.constant 0 : i32
    %c0_i32_0 = arith.constant 0 : i32
    %c0_i32_1 = arith.constant 0 : i32
    return %c0_i32, %c0_i32_0 : i32, i32
  }
  func.func @transform_3(%arg0: i32) -> (i32, i32) {
    %c0_i32 = arith.constant 0 : i32
    %c0_i32_0 = arith.constant 0 : i32
    %c0_i32_1 = arith.constant 0 : i32
    return %c0_i32, %c0_i32_0 : i32, i32
  }
  func.func @transform_4(%arg0: i32) -> (i32, i32) {
    %c0_i32 = arith.constant 0 : i32
    %c0_i32_0 = arith.constant 0 : i32
    %c0_i32_1 = arith.constant 0 : i32
    return %c0_i32, %c0_i32_0 : i32, i32
  }
  func.func @transform_5(%arg0: i32) -> (i32, i32) {
    %c0_i32 = arith.constant 0 : i32
    %c0_i32_0 = arith.constant 0 : i32
    %c0_i32_1 = arith.constant 0 : i32
    return %c0_i32, %c0_i32_0 : i32, i32
  }
  func.func @transform_6(%arg0: i32) -> (i32, i32) {
    %c0_i32 = arith.constant 0 : i32
    %c0_i32_0 = arith.constant 0 : i32
    %c0_i32_1 = arith.constant 0 : i32
    return %c0_i32, %c0_i32_0 : i32, i32
  }
  func.func @transform_7(%arg0: i32) -> (i32, i32) {
    %c0_i32 = arith.constant 0 : i32
    %c0_i32_0 = arith.constant 0 : i32
    return %arg0, %c0_i32 : i32, i32
  }
}

module attributes {stable_mosaic.version = 11 : i64} {
  func.func @_ffn_kernel(%arg0: i32, %arg1: memref<16x128xf32, #tpu.memory_space<vmem>>, %arg2: memref<128x512xbf16, #tpu.memory_space<vmem>>, %arg3: memref<1x512xf32, #tpu.memory_space<vmem>>, %arg4: memref<512x128xbf16, #tpu.memory_space<vmem>>, %arg5: memref<1x128xf32, #tpu.memory_space<vmem>>, %arg6: memref<1x128xf32, #tpu.memory_space<vmem>>, %arg7: memref<1x128xf32, #tpu.memory_space<vmem>>, %arg8: memref<16x128xf32, #tpu.memory_space<vmem>>) attributes {dimension_semantics = [#tpu.dimension_semantics<parallel>], iteration_bounds = array<i64: 2>, scalar_prefetch = 0 : i64, scratch_operands = 0 : i64, tpu.core_type = #tpu.core_type<tc>, window_params = [{transform_indices = @transform_0, window_bounds = array<i64: 16, 128>}, {pipeline_mode = #tpu.pipeline_mode<synchronous>, transform_indices = @transform_1, window_bounds = array<i64: 128, 512>}, {pipeline_mode = #tpu.pipeline_mode<synchronous>, transform_indices = @transform_2, window_bounds = array<i64: 1, 512>}, {pipeline_mode = #tpu.pipeline_mode<synchronous>, transform_indices = @transform_3, window_bounds = array<i64: 512, 128>}, {pipeline_mode = #tpu.pipeline_mode<synchronous>, transform_indices = @transform_4, window_bounds = array<i64: 1, 128>}, {pipeline_mode = #tpu.pipeline_mode<synchronous>, transform_indices = @transform_5, window_bounds = array<i64: 1, 128>}, {pipeline_mode = #tpu.pipeline_mode<synchronous>, transform_indices = @transform_6, window_bounds = array<i64: 1, 128>}, {transform_indices = @transform_7, window_bounds = array<i64: 16, 128>}]} {
    %c0 = arith.constant 0 : index
    %c0_0 = arith.constant 0 : index
    %0 = vector.load %arg1[%c0, %c0_0] : memref<16x128xf32, #tpu.memory_space<vmem>>, vector<16x128xf32>
    %1 = arith.truncf %0 : vector<16x128xf32> to vector<16x128xbf16>
    %c0_1 = arith.constant 0 : index
    %c0_2 = arith.constant 0 : index
    %2 = vector.load %arg2[%c0_1, %c0_2] : memref<128x512xbf16, #tpu.memory_space<vmem>>, vector<128x512xbf16>
    %cst = arith.constant dense<0.000000e+00> : vector<16x512xf32>
    %3 = tpu.matmul %1, %2, %cst {dimension_numbers = #tpu.dot_dimension_numbers<[1], [0], [0], [1], [0, 0, 1, 1], [], []>} : vector<16x128xbf16>, vector<128x512xbf16>, vector<16x512xf32> -> vector<16x512xf32>
    %c0_3 = arith.constant 0 : index
    %c0_4 = arith.constant 0 : index
    %4 = vector.load %arg3[%c0_3, %c0_4] : memref<1x512xf32, #tpu.memory_space<vmem>>, vector<1x512xf32>
    %5 = vector.broadcast %4 : vector<1x512xf32> to vector<16x512xf32>
    %6 = arith.addf %3, %5 : vector<16x512xf32>
    %cst_5 = arith.constant 5.000000e-01 : f32
    %7 = vector.broadcast %cst_5 : f32 to vector<16x512xf32>
    %8 = arith.mulf %7, %6 : vector<16x512xf32>
    %cst_6 = arith.constant 0.707106769 : f32
    %9 = vector.broadcast %cst_6 : f32 to vector<16x512xf32>
    %10 = arith.mulf %6, %9 : vector<16x512xf32>
    %11 = math.erf %10 : vector<16x512xf32>
    %cst_7 = arith.constant 1.000000e+00 : f32
    %12 = vector.broadcast %cst_7 : f32 to vector<16x512xf32>
    %13 = arith.addf %12, %11 : vector<16x512xf32>
    %14 = arith.mulf %8, %13 : vector<16x512xf32>
    %15 = arith.truncf %14 : vector<16x512xf32> to vector<16x512xbf16>
    %c0_8 = arith.constant 0 : index
    %c0_9 = arith.constant 0 : index
    %16 = vector.load %arg4[%c0_8, %c0_9] : memref<512x128xbf16, #tpu.memory_space<vmem>>, vector<512x128xbf16>
    %cst_10 = arith.constant dense<0.000000e+00> : vector<16x128xf32>
    %17 = tpu.matmul %15, %16, %cst_10 {dimension_numbers = #tpu.dot_dimension_numbers<[1], [0], [0], [1], [0, 0, 1, 1], [], []>} : vector<16x512xbf16>, vector<512x128xbf16>, vector<16x128xf32> -> vector<16x128xf32>
    %c0_11 = arith.constant 0 : index
    %c0_12 = arith.constant 0 : index
    %18 = vector.load %arg5[%c0_11, %c0_12] : memref<1x128xf32, #tpu.memory_space<vmem>>, vector<1x128xf32>
    %19 = vector.broadcast %18 : vector<1x128xf32> to vector<16x128xf32>
    %20 = arith.addf %17, %19 : vector<16x128xf32>
    %21 = arith.addf %0, %20 : vector<16x128xf32>
    %cst_13 = arith.constant dense<0.000000e+00> : vector<16xf32>
    %22 = vector.multi_reduction <add>, %21, %cst_13 [1] : vector<16x128xf32> to vector<16xf32>
    %23 = vector.shape_cast %22 : vector<16xf32> to vector<16x1xf32>
    %cst_14 = arith.constant 1.280000e+02 : f32
    %24 = vector.broadcast %cst_14 : f32 to vector<16x1xf32>
    %25 = arith.divf %23, %24 : vector<16x1xf32>
    %26 = arith.mulf %21, %21 : vector<16x128xf32>
    %cst_15 = arith.constant dense<0.000000e+00> : vector<16xf32>
    %27 = vector.multi_reduction <add>, %26, %cst_15 [1] : vector<16x128xf32> to vector<16xf32>
    %28 = vector.shape_cast %27 : vector<16xf32> to vector<16x1xf32>
    %cst_16 = arith.constant 1.280000e+02 : f32
    %29 = vector.broadcast %cst_16 : f32 to vector<16x1xf32>
    %30 = arith.divf %28, %29 : vector<16x1xf32>
    %31 = arith.mulf %25, %25 : vector<16x1xf32>
    %32 = arith.subf %30, %31 : vector<16x1xf32>
    %cst_17 = arith.constant 0.000000e+00 : f32
    %33 = vector.broadcast %cst_17 : f32 to vector<16x1xf32>
    %34 = arith.maximumf %32, %33 : vector<16x1xf32>
    %35 = vector.broadcast %25 : vector<16x1xf32> to vector<16x128xf32>
    %36 = arith.subf %21, %35 : vector<16x128xf32>
    %cst_18 = arith.constant 9.99999974E-6 : f32
    %37 = vector.broadcast %cst_18 : f32 to vector<16x1xf32>
    %38 = arith.addf %34, %37 : vector<16x1xf32>
    %39 = math.rsqrt %38 : vector<16x1xf32>
    %40 = vector.broadcast %39 : vector<16x1xf32> to vector<16x128xf32>
    %41 = arith.mulf %36, %40 : vector<16x128xf32>
    %c0_19 = arith.constant 0 : index
    %c0_20 = arith.constant 0 : index
    %42 = vector.load %arg6[%c0_19, %c0_20] : memref<1x128xf32, #tpu.memory_space<vmem>>, vector<1x128xf32>
    %43 = vector.broadcast %42 : vector<1x128xf32> to vector<16x128xf32>
    %44 = arith.mulf %41, %43 : vector<16x128xf32>
    %c0_21 = arith.constant 0 : index
    %c0_22 = arith.constant 0 : index
    %45 = vector.load %arg7[%c0_21, %c0_22] : memref<1x128xf32, #tpu.memory_space<vmem>>, vector<1x128xf32>
    %46 = vector.broadcast %45 : vector<1x128xf32> to vector<16x128xf32>
    %47 = arith.addf %44, %46 : vector<16x128xf32>
    %c0_23 = arith.constant 0 : index
    %c0_24 = arith.constant 0 : index
    %48 = vector.load %arg8[%c0_23, %c0_24] : memref<16x128xf32, #tpu.memory_space<vmem>>, vector<16x128xf32>
    tpu.vector_store %arg8[%c0_23, %c0_24], %47 {strides = array<i32>} : memref<16x128xf32, #tpu.memory_space<vmem>>, vector<16x128xf32>,
    return
  }
  func.func @transform_0(%arg0: i32) -> (i32, i32) {
    %c0_i32 = arith.constant 0 : i32
    %c0_i32_0 = arith.constant 0 : i32
    return %arg0, %c0_i32 : i32, i32
  }
  func.func @transform_1(%arg0: i32) -> (i32, i32) {
    %c0_i32 = arith.constant 0 : i32
    %c0_i32_0 = arith.constant 0 : i32
    %c0_i32_1 = arith.constant 0 : i32
    return %c0_i32, %c0_i32_0 : i32, i32
  }
  func.func @transform_2(%arg0: i32) -> (i32, i32) {
    %c0_i32 = arith.constant 0 : i32
    %c0_i32_0 = arith.constant 0 : i32
    %c0_i32_1 = arith.constant 0 : i32
    return %c0_i32, %c0_i32_0 : i32, i32
  }
  func.func @transform_3(%arg0: i32) -> (i32, i32) {
    %c0_i32 = arith.constant 0 : i32
    %c0_i32_0 = arith.constant 0 : i32
    %c0_i32_1 = arith.constant 0 : i32
    return %c0_i32, %c0_i32_0 : i32, i32
  }
  func.func @transform_4(%arg0: i32) -> (i32, i32) {
    %c0_i32 = arith.constant 0 : i32
    %c0_i32_0 = arith.constant 0 : i32
    %c0_i32_1 = arith.constant 0 : i32
    return %c0_i32, %c0_i32_0 : i32, i32
  }
  func.func @transform_5(%arg0: i32) -> (i32, i32) {
    %c0_i32 = arith.constant 0 : i32
    %c0_i32_0 = arith.constant 0 : i32
    %c0_i32_1 = arith.constant 0 : i32
    return %c0_i32, %c0_i32_0 : i32, i32
  }
  func.func @transform_6(%arg0: i32) -> (i32, i32) {
    %c0_i32 = arith.constant 0 : i32
    %c0_i32_0 = arith.constant 0 : i32
    %c0_i32_1 = arith.constant 0 : i32
    return %c0_i32, %c0_i32_0 : i32, i32
  }
  func.func @transform_7(%arg0: i32) -> (i32, i32) {
    %c0_i32 = arith.constant 0 : i32
    %c0_i32_0 = arith.constant 0 : i32
    return %arg0, %c0_i32 : i32, i32
  }
}

</mosaic_0001>

<llo_original>
// kernel: tpu_custom_call.1
$region0: #{tpu_custom_call.1}
  #allocation0 [shape = 'u32[]', space=smem, size = 0x4, offset = 0x4, fixed_abs, tag = 'smem constant byte address 0x4 - core index']
  #allocation1 [shape = 'u32[144,128]{1,0:T(1,128)}', space=vmem, size = 0x12000, scoped, tag = 'internal scratch']
  %s0 = inlined_call_operand.hbm [shape: f32[32,128], index: 0, kind: input, shape index: {}]
  %s1 = inlined_call_operand.hbm [shape: bf16[128,512], index: 1, kind: input, shape index: {}]
  %s2 = inlined_call_operand.vmem [shape: f32[1,512], index: 2, kind: input, shape index: {}]
  %s3 = inlined_call_operand.hbm [shape: bf16[512,128], index: 3, kind: input, shape index: {}]
  %s4 = inlined_call_operand.vmem [shape: f32[1,128], index: 4, kind: input, shape index: {}]
  %s5 = inlined_call_operand.vmem [shape: f32[1,128], index: 5, kind: input, shape index: {}]
  %s6 = inlined_call_operand.vmem [shape: f32[1,128], index: 6, kind: input, shape index: {}]
  %s7 = inlined_call_operand.hbm [shape: f32[32,128], index: 7, kind: output, shape index: {}]
  %s8 = sld [smem:[#allocation0]]
  $region73: #{tpu_custom_call.1} parent=0
    _
  %s10 = ssub.s32 1, %s8
  %s11 = scalar_select 0, %s10, %s8
  $region1: #{tpu_custom_call.1} parent=0
    #allocation2 [shape = 'u8[16384]{0}', space=vmem, size = 0x4000, scoped, tag = 'input window, operand 0']
    #allocation3 [shape = 's32[2]{0}', space=sflag, size = 0x8, scoped, tag = 'scoped memory for tpu_custom_call.1']
    #allocation4 [shape = 's32[2]{0}', space=sflag, size = 0x8, scoped, tag = 'scoped memory for tpu_custom_call.1']
    #allocation5 [shape = 'u8[131072]{0}', space=vmem, size = 0x20000, scoped, tag = 'input window, operand 1, single buffered']
    #allocation6 [shape = 's32[1]{0}', space=sflag, size = 0x4, scoped, tag = 'scoped memory for tpu_custom_call.1']
    #allocation7 [shape = 'u8[131072]{0}', space=vmem, size = 0x20000, scoped, tag = 'input window, operand 3, single buffered']
    #allocation8 [shape = 'u8[16384]{0}', space=vmem, size = 0x4000, scoped, tag = 'output window, operand 0']
    %12 = vsyncpa [#allocation3], 0
    %s13 = scalar_lea.sflag [#allocation3], 1
    %14 = vsyncpa %s13, 0
    %15 = vsyncpa [#allocation6], 0
    %16 = vsyncpa [#allocation4], 0
    %s17 = scalar_lea.sflag [#allocation4], 1
    %18 = vsyncpa %s17, 0
    loop: start=0, step=1, limit=4
    $region2: #{tpu_custom_call.1} parent=1 // loop_pre_header
      _
    $region3: #{tpu_custom_call.1} parent=1 // loop_header
      %s20 = sphi 0, %s24
      %p21 = scmp.ge.s32.totalorder %s20, 4
      %s30 = sphi 0, %s32
      %s33 = sphi 0, %s30
      %s34 = sphi 0, %s33
      %s50 = sphi 0, %s34
      %s54 = sphi 0, %s54
      %s56 = sphi 0, %s54
      %s57 = sphi 0, %s56
      %s71 = sphi 0, %s57
      %s75 = sphi 0, %s75
      %s77 = sphi 0, %s75
      %s78 = sphi 0, %s77
      %s92 = sphi 0, %s78
      %s96 = sphi 0, %s96
      %s98 = sphi 0, %s96
      %s99 = sphi 0, %s98
      %s113 = sphi 0, %s99
      %s117 = sphi 0, %s117
      %s119 = sphi 0, %s117
      %s120 = sphi 0, %s119
      %s134 = sphi 0, %s120
      %s138 = sphi 0, %s138
      %s140 = sphi 0, %s138
      %s141 = sphi 0, %s140
      %s155 = sphi 0, %s141
      %s159 = sphi 0, %s159
      %s161 = sphi 0, %s159
      %s162 = sphi 0, %s161
      %s176 = sphi 0, %s162
      %s182 = sphi 0, %s184
      %s185 = sphi 0, %s182
      %s186 = sphi 0, %s185
      %s202 = sphi 0, %s186
    $region4: #{tpu_custom_call.1} parent=1 // loop_header_branch
      %23 = sbr.rel (%p21) target = $region8
    $region5: #{tpu_custom_call.1} parent=1 // loop_body
      %s25 = ssub.s32 %s20, 1
      %s26 = ssub.s32 %s20, 2
      %s27 = sadd.s32 %s20, 1
      %s28 = ssub.s32 %s20, %s27
      %p29 = scmp.eq.s32.totalorder %s28, 0
      %s31 = sadd.s32 %s30, 1
      %s32 = scalar_select %p29, %s30, %s31
      %p35 = pneg %p29
      %p36 = scmp.eq.s32.totalorder %s20, 1
      %p37 = por %p35, %p36
      %p38 = scmp.ne.s32.totalorder %s30, %s33
      %p39 = scmp.eq.s32.totalorder %s20, 0
      %p40 = por %p38, %p39
      %p41 = scmp.ne.s32.totalorder %s30, %s33
      %p42 = scmp.eq.s32.totalorder %s25, 1
      %p43 = por %p41, %p42
      %p44 = scmp.ne.s32.totalorder %s33, %s34
      %p45 = scmp.eq.s32.totalorder %s25, 0
      %p46 = por %p44, %p45
      %p47 = scmp.ne.s32.totalorder %s33, %s34
      %p48 = scmp.eq.s32.totalorder %s26, 1
      %p49 = por %p47, %p48
      %p51 = scmp.ne.s32.totalorder %s34, %s50
      %p52 = scmp.eq.s32.totalorder %s26, 0
      %p53 = por %p51, %p52
      %s55 = sadd.s32 %s54, 1
      %p58 = scmp.eq.s32.totalorder %s20, 1
      %p59 = scmp.ne.s32.totalorder %s54, %s56
      %p60 = scmp.eq.s32.totalorder %s20, 0
      %p61 = por %p59, %p60
      %p62 = scmp.ne.s32.totalorder %s54, %s56
      %p63 = scmp.eq.s32.totalorder %s25, 1
      %p64 = por %p62, %p63
      %p65 = scmp.ne.s32.totalorder %s56, %s57
      %p66 = scmp.eq.s32.totalorder %s25, 0
      %p67 = por %p65, %p66
      %p68 = scmp.ne.s32.totalorder %s56, %s57
      %p69 = scmp.eq.s32.totalorder %s26, 1
      %p70 = por %p68, %p69
      %p72 = scmp.ne.s32.totalorder %s57, %s71
      %p73 = scmp.eq.s32.totalorder %s26, 0
      %p74 = por %p72, %p73
      %s76 = sadd.s32 %s75, 1
      %p79 = scmp.eq.s32.totalorder %s20, 1
      %p80 = scmp.ne.s32.totalorder %s75, %s77
      %p81 = scmp.eq.s32.totalorder %s20, 0
      %p82 = por %p80, %p81
      %p83 = scmp.ne.s32.totalorder %s75, %s77
      %p84 = scmp.eq.s32.totalorder %s25, 1
      %p85 = por %p83, %p84
      %p86 = scmp.ne.s32.totalorder %s77, %s78
      %p87 = scmp.eq.s32.totalorder %s25, 0
      %p88 = por %p86, %p87
      %p89 = scmp.ne.s32.totalorder %s77, %s78
      %p90 = scmp.eq.s32.totalorder %s26, 1
      %p91 = por %p89, %p90
      %p93 = scmp.ne.s32.totalorder %s78, %s92
      %p94 = scmp.eq.s32.totalorder %s26, 0
      %p95 = por %p93, %p94
      %s97 = sadd.s32 %s96, 1
      %p100 = scmp.eq.s32.totalorder %s20, 1
      %p101 = scmp.ne.s32.totalorder %s96, %s98
      %p102 = scmp.eq.s32.totalorder %s20, 0
      %p103 = por %p101, %p102
      %p104 = scmp.ne.s32.totalorder %s96, %s98
      %p105 = scmp.eq.s32.totalorder %s25, 1
      %p106 = por %p104, %p105
      %p107 = scmp.ne.s32.totalorder %s98, %s99
      %p108 = scmp.eq.s32.totalorder %s25, 0
      %p109 = por %p107, %p108
      %p110 = scmp.ne.s32.totalorder %s98, %s99
      %p111 = scmp.eq.s32.totalorder %s26, 1
      %p112 = por %p110, %p111
      %p114 = scmp.ne.s32.totalorder %s99, %s113
      %p115 = scmp.eq.s32.totalorder %s26, 0
      %p116 = por %p114, %p115
      %s118 = sadd.s32 %s117, 1
      %p121 = scmp.eq.s32.totalorder %s20, 1
      %p122 = scmp.ne.s32.totalorder %s117, %s119
      %p123 = scmp.eq.s32.totalorder %s20, 0
      %p124 = por %p122, %p123
      %p125 = scmp.ne.s32.totalorder %s117, %s119
      %p126 = scmp.eq.s32.totalorder %s25, 1
      %p127 = por %p125, %p126
      %p128 = scmp.ne.s32.totalorder %s119, %s120
      %p129 = scmp.eq.s32.totalorder %s25, 0
      %p130 = por %p128, %p129
      %p131 = scmp.ne.s32.totalorder %s119, %s120
      %p132 = scmp.eq.s32.totalorder %s26, 1
      %p133 = por %p131, %p132
      %p135 = scmp.ne.s32.totalorder %s120, %s134
      %p136 = scmp.eq.s32.totalorder %s26, 0
      %p137 = por %p135, %p136
      %s139 = sadd.s32 %s138, 1
      %p142 = scmp.eq.s32.totalorder %s20, 1
      %p143 = scmp.ne.s32.totalorder %s138, %s140
      %p144 = scmp.eq.s32.totalorder %s20, 0
      %p145 = por %p143, %p144
      %p146 = scmp.ne.s32.totalorder %s138, %s140
      %p147 = scmp.eq.s32.totalorder %s25, 1
      %p148 = por %p146, %p147
      %p149 = scmp.ne.s32.totalorder %s140, %s141
      %p150 = scmp.eq.s32.totalorder %s25, 0
      %p151 = por %p149, %p150
      %p152 = scmp.ne.s32.totalorder %s140, %s141
      %p153 = scmp.eq.s32.totalorder %s26, 1
      %p154 = por %p152, %p153
      %p156 = scmp.ne.s32.totalorder %s141, %s155
      %p157 = scmp.eq.s32.totalorder %s26, 0
      %p158 = por %p156, %p157
      %s160 = sadd.s32 %s159, 1
      %p163 = scmp.eq.s32.totalorder %s20, 1
      %p164 = scmp.ne.s32.totalorder %s159, %s161
      %p165 = scmp.eq.s32.totalorder %s20, 0
      %p166 = por %p164, %p165
      %p167 = scmp.ne.s32.totalorder %s159, %s161
      %p168 = scmp.eq.s32.totalorder %s25, 1
      %p169 = por %p167, %p168
      %p170 = scmp.ne.s32.totalorder %s161, %s162
      %p171 = scmp.eq.s32.totalorder %s25, 0
      %p172 = por %p170, %p171
      %p173 = scmp.ne.s32.totalorder %s161, %s162
      %p174 = scmp.eq.s32.totalorder %s26, 1
      %p175 = por %p173, %p174
      %p177 = scmp.ne.s32.totalorder %s162, %s176
      %p178 = scmp.eq.s32.totalorder %s26, 0
      %p179 = por %p177, %p178
      %s180 = ssub.s32 %s20, %s27
      %p181 = scmp.eq.s32.totalorder %s180, 0
      %s183 = sadd.s32 %s182, 1
      %s184 = scalar_select %p181, %s182, %s183
      %p187 = pneg %p181
      %p188 = scmp.eq.s32.totalorder %s20, 1
      %p189 = por %p187, %p188
      %p190 = scmp.ne.s32.totalorder %s182, %s185
      %p191 = scmp.eq.s32.totalorder %s20, 0
      %p192 = por %p190, %p191
      %p193 = scmp.ne.s32.totalorder %s182, %s185
      %p194 = scmp.eq.s32.totalorder %s25, 1
      %p195 = por %p193, %p194
      %p196 = scmp.ne.s32.totalorder %s185, %s186
      %p197 = scmp.eq.s32.totalorder %s25, 0
      %p198 = por %p196, %p197
      %p199 = scmp.ne.s32.totalorder %s185, %s186
      %p200 = scmp.eq.s32.totalorder %s26, 1
      %p201 = por %p199, %p200
      %p203 = scmp.ne.s32.totalorder %s186, %s202
      %p204 = scmp.eq.s32.totalorder %s26, 0
      %p205 = por %p203, %p204
      %p206 = scmp.le.s32.totalorder 1, %s20
      %p207 = scmp.lt.s32.totalorder %s20, 3
      %p208 = pnand %p206, %p207
      %p209 = pneg %p208
      // Predicated region
      $region9: #{tpu_custom_call.1} parent=5 // pred_check
        _
      $region10: #{tpu_custom_call.1} parent=5 // pred_check_branch
        %211 = sbr.rel (%p208) target = $region12
      $region11: #{tpu_custom_call.1} parent=5 // pred_region
        %s212 = ssub.s32 %s20, 1
        // Predicated region
        $region13: #{tpu_custom_call.1} parent=11 // pred_check
          %p213 = pneg %p67
        $region14: #{tpu_custom_call.1} parent=11 // pred_check_branch
          %215 = sbr.rel (%p213) target = $region16
        $region15: #{tpu_custom_call.1} parent=11 // pred_region
          %s217 = ssub.s32 4096, 4096
          %218 = vsyncadd [#allocation6], %s217
          %s219 = sshll.u32 [#allocation5], 4
          %s220 = int_to_ptr.vmem [resolvable:$true] %s219
          %225 = dma.hbm_to_vmem [thread:$0]  %s1, 4096, %s220, [#allocation6], 256, 256, 16
        $region16: #{tpu_custom_call.1} parent=11 // pred_fallthru
          _
        // Predicated region
        $region17: #{tpu_custom_call.1} parent=11 // pred_check
          %p226 = pneg %p88
        $region18: #{tpu_custom_call.1} parent=11 // pred_check_branch
          %228 = sbr.rel (%p226) target = $region20
        $region19: #{tpu_custom_call.1} parent=11 // pred_region
          _
        $region20: #{tpu_custom_call.1} parent=11 // pred_fallthru
          _
        // Predicated region
        $region21: #{tpu_custom_call.1} parent=11 // pred_check
          %p229 = pneg %p109
        $region22: #{tpu_custom_call.1} parent=11 // pred_check_branch
          %231 = sbr.rel (%p229) target = $region24
        $region23: #{tpu_custom_call.1} parent=11 // pred_region
          %s233 = ssub.s32 4096, 4096
          %234 = vsyncadd [#allocation6], %s233
          %s235 = sshll.u32 [#allocation7], 4
          %s236 = int_to_ptr.vmem [resolvable:$true] %s235
          %241 = dma.hbm_to_vmem [thread:$0]  %s3, 4096, %s236, [#allocation6], 64, 64, 4
        $region24: #{tpu_custom_call.1} parent=11 // pred_fallthru
          _
        // Predicated region
        $region25: #{tpu_custom_call.1} parent=11 // pred_check
          %p242 = pneg %p130
        $region26: #{tpu_custom_call.1} parent=11 // pred_check_branch
          %244 = sbr.rel (%p242) target = $region28
        $region27: #{tpu_custom_call.1} parent=11 // pred_region
          _
        $region28: #{tpu_custom_call.1} parent=11 // pred_fallthru
          _
        // Predicated region
        $region29: #{tpu_custom_call.1} parent=11 // pred_check
          %p245 = pneg %p151
        $region30: #{tpu_custom_call.1} parent=11 // pred_check_branch
          %247 = sbr.rel (%p245) target = $region32
        $region31: #{tpu_custom_call.1} parent=11 // pred_region
          _
        $region32: #{tpu_custom_call.1} parent=11 // pred_fallthru
          _
        // Predicated region
        $region33: #{tpu_custom_call.1} parent=11 // pred_check
          %p248 = pneg %p172
        $region34: #{tpu_custom_call.1} parent=11 // pred_check_branch
          %250 = sbr.rel (%p248) target = $region36
        $region35: #{tpu_custom_call.1} parent=11 // pred_region
          _
        $region36: #{tpu_custom_call.1} parent=11 // pred_fallthru
          _
      $region12: #{tpu_custom_call.1} parent=5 // pred_fallthru
        _
      %p251 = scmp.lt.s32.totalorder %s20, 2
      // Predicated region
      $region37: #{tpu_custom_call.1} parent=5 // pred_check
        %p252 = pneg %p251
      $region38: #{tpu_custom_call.1} parent=5 // pred_check_branch
        %254 = sbr.rel (%p252) target = $region40
      $region39: #{tpu_custom_call.1} parent=5 // pred_region
        // Predicated region
        $region41: #{tpu_custom_call.1} parent=39 // pred_check
          %p255 = pneg %p40
        $region42: #{tpu_custom_call.1} parent=39 // pred_check_branch
          %257 = sbr.rel (%p255) target = $region44
        $region43: #{tpu_custom_call.1} parent=39 // pred_region
          %s258 = sand.u32 %s30, 1
          %s259 = scalar_lea.sflag [#allocation3], %s258
          %s260 = sand.u32 %s30, 1
          %s261 = smul.addr %s260, 16
          %s262 = scalar_lea.vmem [#allocation2], %s261
          %s263 = smul.u32 2, %s20
          %s265 = ssub.s32 256, 256
          %266 = vsyncadd %s259, %s265
          %s267 = smul.addr %s263, 128
          %s268 = scalar_lea.hbm %s0, %s267
          %s269 = sshll.u32 %s262, 4
          %s270 = int_to_ptr.vmem [resolvable:$true] %s269
          %275 = dma.hbm_to_vmem [thread:$0]  %s268, 256, %s270, %s259, 128, 128, 8
        $region44: #{tpu_custom_call.1} parent=39 // pred_fallthru
          _
      $region40: #{tpu_custom_call.1} parent=5 // pred_fallthru
        _
      %p276 = scmp.le.s32.totalorder 1, %s20
      %p277 = scmp.lt.s32.totalorder %s20, 3
      %p278 = pnand %p276, %p277
      %p279 = pneg %p278
      // Predicated region
      $region45: #{tpu_custom_call.1} parent=5 // pred_check
        _
      $region46: #{tpu_custom_call.1} parent=5 // pred_check_branch
        %281 = sbr.rel (%p278) target = $region48
      $region47: #{tpu_custom_call.1} parent=5 // pred_region
        %s282 = ssub.s32 %s20, 1
        %s283 = sand.u32 %s33, 1
        %s284 = scalar_lea.sflag [#allocation3], %s283
        %s285 = sand.u32 %s33, 1
        %s286 = smul.addr %s285, 16
        %s287 = scalar_lea.vmem [#allocation2], %s286
        // Predicated region
        $region49: #{tpu_custom_call.1} parent=47 // pred_check
          %p288 = pneg %p46
        $region50: #{tpu_custom_call.1} parent=47 // pred_check_branch
          %290 = sbr.rel (%p288) target = $region52
        $region51: #{tpu_custom_call.1} parent=47 // pred_region
          %291 = dma.done %s284, 256
        $region52: #{tpu_custom_call.1} parent=47 // pred_fallthru
          _
        // Predicated region
        $region53: #{tpu_custom_call.1} parent=47 // pred_check
          %p292 = pneg %p67
        $region54: #{tpu_custom_call.1} parent=47 // pred_check_branch
          %294 = sbr.rel (%p292) target = $region56
        $region55: #{tpu_custom_call.1} parent=47 // pred_region
          %295 = dma.done [#allocation6], 4096
        $region56: #{tpu_custom_call.1} parent=47 // pred_fallthru
          _
        // Predicated region
        $region57: #{tpu_custom_call.1} parent=47 // pred_check
          %p296 = pneg %p109
        $region58: #{tpu_custom_call.1} parent=47 // pred_check_branch
          %298 = sbr.rel (%p296) target = $region60
        $region59: #{tpu_custom_call.1} parent=47 // pred_region
          %299 = dma.done [#allocation6], 4096
        $region60: #{tpu_custom_call.1} parent=47 // pred_fallthru
          _
        %s300 = sand.u32 %s33, 1
        %s301 = scalar_lea.sflag [#allocation3], %s300
        %s302 = sand.u32 %s33, 1
        %s303 = smul.addr %s302, 16
        %s304 = scalar_lea.vmem [#allocation2], %s303
        %p305 = pneg %p46
        %p306 = pneg %p43
        %p307 = pneg %p67
        %p308 = pneg %p64
        %p309 = pneg %p88
        %p310 = pneg %p85
        %p311 = pneg %p109
        %p312 = pneg %p106
        %p313 = pneg %p130
        %p314 = pneg %p127
        %p315 = pneg %p151
        %p316 = pneg %p148
        %p317 = pneg %p172
        %p318 = pneg %p169
        %p319 = pneg %p198
        %p320 = pneg %p195
        %s321 = sand.u32 %s185, 1
        %s322 = scalar_lea.sflag [#allocation4], %s321
        %s323 = sand.u32 %s185, 1
        %s324 = smul.addr %s323, 16
        %s325 = scalar_lea.vmem [#allocation8], %s324
        %s326 = smul.u32 2, %s25
        %s327 = smul.u32 2, %s25
        %v329 = vld [vmem:[%s287] sm:$0xff]
        %v330 = vld [vmem:[%s287 + $0x8] sm:$0xff]
        %v331 = vpack.c.bf16 %v330, %v329
        %v332 = vld [vmem:[#allocation5] sm:$0xff]
        %v333 = vld [vmem:[#allocation5 + $0x8] sm:$0xff]
        %v334 = vld [vmem:[#allocation5 + $0x10] sm:$0xff]
        %v335 = vld [vmem:[#allocation5 + $0x18] sm:$0xff]
        %v336 = vld [vmem:[#allocation5 + $0x20] sm:$0xff]
        %v337 = vld [vmem:[#allocation5 + $0x28] sm:$0xff]
        %v338 = vld [vmem:[#allocation5 + $0x30] sm:$0xff]
        %v339 = vld [vmem:[#allocation5 + $0x38] sm:$0xff]
        %v340 = vld [vmem:[#allocation5 + $0x40] sm:$0xff]
        %v341 = vld [vmem:[#allocation5 + $0x48] sm:$0xff]
        %v342 = vld [vmem:[#allocation5 + $0x50] sm:$0xff]
        %v343 = vld [vmem:[#allocation5 + $0x58] sm:$0xff]
        %v344 = vld [vmem:[#allocation5 + $0x60] sm:$0xff]
        %v345 = vld [vmem:[#allocation5 + $0x68] sm:$0xff]
        %v346 = vld [vmem:[#allocation5 + $0x70] sm:$0xff]
        %v347 = vld [vmem:[#allocation5 + $0x78] sm:$0xff]
        %v348 = vld [vmem:[#allocation5 + $0x80] sm:$0xff]
        %v349 = vld [vmem:[#allocation5 + $0x88] sm:$0xff]
        %v350 = vld [vmem:[#allocation5 + $0x90] sm:$0xff]
        %v351 = vld [vmem:[#allocation5 + $0x98] sm:$0xff]
        %v352 = vld [vmem:[#allocation5 + $0xa0] sm:$0xff]
        %v353 = vld [vmem:[#allocation5 + $0xa8] sm:$0xff]
        %v354 = vld [vmem:[#allocation5 + $0xb0] sm:$0xff]
        %v355 = vld [vmem:[#allocation5 + $0xb8] sm:$0xff]
        %v356 = vld [vmem:[#allocation5 + $0xc0] sm:$0xff]
        %v357 = vld [vmem:[#allocation5 + $0xc8] sm:$0xff]
        %v358 = vld [vmem:[#allocation5 + $0xd0] sm:$0xff]
        %v359 = vld [vmem:[#allocation5 + $0xd8] sm:$0xff]
        %v360 = vld [vmem:[#allocation5 + $0xe0] sm:$0xff]
        %v361 = vld [vmem:[#allocation5 + $0xe8] sm:$0xff]
        %v362 = vld [vmem:[#allocation5 + $0xf0] sm:$0xff]
        %v363 = vld [vmem:[#allocation5 + $0xf8] sm:$0xff]
        %v364 = vld [vmem:[%s2] sm:$0xf]
        %v366 = vlaneseq
        %v367 = vshrl.u32 %v366, 7
        %v368 = vsub.s32 0, %v367
        %v369 = vrot.slane %v364, %v368
        %v370 = vlaneseq
        %v371 = vshrl.u32 %v370, 7
        %v372 = vsub.s32 1, %v371
        %v373 = vrot.slane %v364, %v372
        %v374 = vlaneseq
        %v375 = vshrl.u32 %v374, 7
        %v376 = vsub.s32 2, %v375
        %v377 = vrot.slane %v364, %v376
        %v378 = vlaneseq
        %v379 = vshrl.u32 %v378, 7
        %v380 = vsub.s32 3, %v379
        %v381 = vrot.slane %v364, %v380
        %v418 = vunpack.c.l.b16 %v332
        %v419 = vunpack.c.h.b16 %v332
        %v420 = vunpack.c.l.b16 %v333
        %v421 = vunpack.c.h.b16 %v333
        %v422 = vunpack.c.l.b16 %v334
        %v423 = vunpack.c.h.b16 %v334
        %v424 = vunpack.c.l.b16 %v335
        %v425 = vunpack.c.h.b16 %v335
        %v426 = vunpack.c.l.b16 %v336
        %v427 = vunpack.c.h.b16 %v336
        %v428 = vunpack.c.l.b16 %v337
        %v429 = vunpack.c.h.b16 %v337
        %v430 = vunpack.c.l.b16 %v338
        %v431 = vunpack.c.h.b16 %v338
        %v432 = vunpack.c.l.b16 %v339
        %v433 = vunpack.c.h.b16 %v339
        %v434 = vunpack.c.l.b16 %v340
        %v435 = vunpack.c.h.b16 %v340
        %v436 = vunpack.c.l.b16 %v341
        %v437 = vunpack.c.h.b16 %v341
        %v438 = vunpack.c.l.b16 %v342
        %v439 = vunpack.c.h.b16 %v342
        %v440 = vunpack.c.l.b16 %v343
        %v441 = vunpack.c.h.b16 %v343
        %v442 = vunpack.c.l.b16 %v344
        %v443 = vunpack.c.h.b16 %v344
        %v444 = vunpack.c.l.b16 %v345
        %v445 = vunpack.c.h.b16 %v345
        %v446 = vunpack.c.l.b16 %v346
        %v447 = vunpack.c.h.b16 %v346
        %v448 = vunpack.c.l.b16 %v347
        %v449 = vunpack.c.h.b16 %v347
        %v450 = vunpack.c.l.b16 %v348
        %v451 = vunpack.c.h.b16 %v348
        %v452 = vunpack.c.l.b16 %v349
        %v453 = vunpack.c.h.b16 %v349
        %v454 = vunpack.c.l.b16 %v350
        %v455 = vunpack.c.h.b16 %v350
        %v456 = vunpack.c.l.b16 %v351
        %v457 = vunpack.c.h.b16 %v351
        %v458 = vunpack.c.l.b16 %v352
        %v459 = vunpack.c.h.b16 %v352
        %v460 = vunpack.c.l.b16 %v353
        %v461 = vunpack.c.h.b16 %v353
        %v462 = vunpack.c.l.b16 %v354
        %v463 = vunpack.c.h.b16 %v354
        %v464 = vunpack.c.l.b16 %v355
        %v465 = vunpack.c.h.b16 %v355
        %v466 = vunpack.c.l.b16 %v356
        %v467 = vunpack.c.h.b16 %v356
        %v468 = vunpack.c.l.b16 %v357
        %v469 = vunpack.c.h.b16 %v357
        %v470 = vunpack.c.l.b16 %v358
        %v471 = vunpack.c.h.b16 %v358
        %v472 = vunpack.c.l.b16 %v359
        %v473 = vunpack.c.h.b16 %v359
        %v474 = vunpack.c.l.b16 %v360
        %v475 = vunpack.c.h.b16 %v360
        %v476 = vunpack.c.l.b16 %v361
        %v477 = vunpack.c.h.b16 %v361
        %v478 = vunpack.c.l.b16 %v362
        %v479 = vunpack.c.h.b16 %v362
        %v480 = vunpack.c.l.b16 %v363
        %v481 = vunpack.c.h.b16 %v363
        %v482 = vpack.c.b16 %v422, %v418
        %v483 = vpack.c.b16 %v423, %v419
        %v484 = vpack.c.b16 %v424, %v420
        %v485 = vpack.c.b16 %v425, %v421
        %v486 = vpack.c.b16 %v430, %v426
        %v487 = vpack.c.b16 %v431, %v427
        %v488 = vpack.c.b16 %v432, %v428
        %v489 = vpack.c.b16 %v433, %v429
        %v490 = vpack.c.b16 %v438, %v434
        %v491 = vpack.c.b16 %v439, %v435
        %v492 = vpack.c.b16 %v440, %v436
        %v493 = vpack.c.b16 %v441, %v437
        %v494 = vpack.c.b16 %v446, %v442
        %v495 = vpack.c.b16 %v447, %v443
        %v496 = vpack.c.b16 %v448, %v444
        %v497 = vpack.c.b16 %v449, %v445
        %v498 = vpack.c.b16 %v454, %v450
        %v499 = vpack.c.b16 %v455, %v451
        %v500 = vpack.c.b16 %v456, %v452
        %v501 = vpack.c.b16 %v457, %v453
        %v502 = vpack.c.b16 %v462, %v458
        %v503 = vpack.c.b16 %v463, %v459
        %v504 = vpack.c.b16 %v464, %v460
        %v505 = vpack.c.b16 %v465, %v461
        %v506 = vpack.c.b16 %v470, %v466
        %v507 = vpack.c.b16 %v471, %v467
        %v508 = vpack.c.b16 %v472, %v468
        %v509 = vpack.c.b16 %v473, %v469
        %v510 = vpack.c.b16 %v478, %v474
        %v511 = vpack.c.b16 %v479, %v475
        %v512 = vpack.c.b16 %v480, %v476
        %v513 = vpack.c.b16 %v481, %v477
        %546 = vmatprep.subr.bf16.mxu0 %v483
        %547 = vmatpush1.bf16.msra.mxu0 %v482
        %548 = vmatprep.subr.bf16.mxu0 %v487
        %549 = vmatpush1.bf16.msra.mxu0 %v486
        %550 = vmatprep.subr.bf16.mxu0 %v491
        %551 = vmatpush1.bf16.msra.mxu0 %v490
        %552 = vmatprep.subr.bf16.mxu0 %v495
        %553 = vmatpush1.bf16.msra.mxu0 %v494
        %554 = vmatprep.subr.bf16.mxu0 %v499
        %555 = vmatpush1.bf16.msra.mxu0 %v498
        %556 = vmatprep.subr.bf16.mxu0 %v503
        %557 = vmatpush1.bf16.msra.mxu0 %v502
        %558 = vmatprep.subr.bf16.mxu0 %v507
        %559 = vmatpush1.bf16.msra.mxu0 %v506
        %560 = vmatprep.subr.bf16.mxu0 %v511
        %561 = vmatpush1.bf16.msra.mxu0 %v510
        %562 = vmatprep.subr.bf16.mxu0 0
        %563 = vmatpush1.bf16.msra.mxu0 0
        %564 = vmatprep.subr.bf16.mxu0 0
        %565 = vmatpush1.bf16.msra.mxu0 0
        %566 = vmatprep.subr.bf16.mxu0 0
        %567 = vmatpush1.bf16.msra.mxu0 0
        %568 = vmatprep.subr.bf16.mxu0 0
        %569 = vmatpush1.bf16.msra.mxu0 0
        %570 = vmatprep.subr.bf16.mxu0 0
        %571 = vmatpush1.bf16.msra.mxu0 0
        %572 = vmatprep.subr.bf16.mxu0 0
        %573 = vmatpush1.bf16.msra.mxu0 0
        %574 = vmatprep.subr.bf16.mxu0 0
        %575 = vmatpush1.bf16.msra.mxu0 0
        %576 = vmatprep.subr.bf16.mxu0 0
        %577 = vmatpush1.bf16.msra.mxu0 0
        %578 = vmatprep.mubr.bf16.mxu0 0
        %579 = vmatmul.mubr.bf16.gmra.mrb[0].mxu0 %v331
        %v580 = vpop.f32.mrb[0].mxu0
        %v581 = vadd.f32 %v369, %v580
        %v582 = vpop.f32.mrb[0].mxu0
        %v583 = vadd.f32 %v373, %v582
        %v584 = vpop.f32.mrb[0].mxu0
        %v585 = vadd.f32 %v369, %v584
        %v586 = vpop.f32.mrb[0].mxu0
        %v587 = vadd.f32 %v373, %v586
        %588 = vdwg.mxu0
        %589 = vmatprep.subr.bf16.mxu0 %v485
        %590 = vmatpush1.bf16.msra.mxu0 %v484
        %591 = vmatprep.subr.bf16.mxu0 %v489
        %592 = vmatpush1.bf16.msra.mxu0 %v488
        %593 = vmatprep.subr.bf16.mxu0 %v493
        %594 = vmatpush1.bf16.msra.mxu0 %v492
        %595 = vmatprep.subr.bf16.mxu0 %v497
        %596 = vmatpush1.bf16.msra.mxu0 %v496
        %597 = vmatprep.subr.bf16.mxu0 %v501
        %598 = vmatpush1.bf16.msra.mxu0 %v500
        %599 = vmatprep.subr.bf16.mxu0 %v505
        %600 = vmatpush1.bf16.msra.mxu0 %v504
        %601 = vmatprep.subr.bf16.mxu0 %v509
        %602 = vmatpush1.bf16.msra.mxu0 %v508
        %603 = vmatprep.subr.bf16.mxu0 %v513
        %604 = vmatpush1.bf16.msra.mxu0 %v512
        %605 = vmatprep.subr.bf16.mxu0 0
        %606 = vmatpush1.bf16.msra.mxu0 0
        %607 = vmatprep.subr.bf16.mxu0 0
        %608 = vmatpush1.bf16.msra.mxu0 0
        %609 = vmatprep.subr.bf16.mxu0 0
        %610 = vmatpush1.bf16.msra.mxu0 0
        %611 = vmatprep.subr.bf16.mxu0 0
        %612 = vmatpush1.bf16.msra.mxu0 0
        %613 = vmatprep.subr.bf16.mxu0 0
        %614 = vmatpush1.bf16.msra.mxu0 0
        %615 = vmatprep.subr.bf16.mxu0 0
        %616 = vmatpush1.bf16.msra.mxu0 0
        %617 = vmatprep.subr.bf16.mxu0 0
        %618 = vmatpush1.bf16.msra.mxu0 0
        %619 = vmatprep.subr.bf16.mxu0 0
        %620 = vmatpush1.bf16.msra.mxu0 0
        %621 = vmatprep.mubr.bf16.mxu0 0
        %622 = vmatmul.mubr.bf16.gmra.mrb[0].mxu0 %v331
        %v623 = vpop.f32.mrb[0].mxu0
        %v624 = vadd.f32 %v377, %v623
        %v625 = vpop.f32.mrb[0].mxu0
        %v626 = vadd.f32 %v381, %v625
        %v627 = vpop.f32.mrb[0].mxu0
        %v628 = vadd.f32 %v377, %v627
        %v629 = vpop.f32.mrb[0].mxu0
        %v630 = vadd.f32 %v381, %v629
        %631 = vdwg.mxu0
        %v632 = vmul.f32 %v581, 0.5
        %v633 = vmul.f32 %v583, 0.5
        %v634 = vmul.f32 %v624, 0.5
        %v635 = vmul.f32 %v626, 0.5
        %v636 = vmul.f32 %v585, 0.5
        %v637 = vmul.f32 %v587, 0.5
        %v638 = vmul.f32 %v628, 0.5
        %v639 = vmul.f32 %v630, 0.5
        %v640 = vmul.f32 %v581, 0.70710677
        %v641 = vmul.f32 %v583, 0.70710677
        %v642 = vmul.f32 %v624, 0.70710677
        %v643 = vmul.f32 %v626, 0.70710677
        %v644 = vmul.f32 %v585, 0.70710677
        %v645 = vmul.f32 %v587, 0.70710677
        %v646 = vmul.f32 %v628, 0.70710677
        %v647 = vmul.f32 %v630, 0.70710677
        %v648 = verf.f32.pop %v640
        %v649 = verf.f32.pop %v641
        %v650 = verf.f32.pop %v642
        %v651 = verf.f32.pop %v643
        %v652 = verf.f32.pop %v644
        %v653 = verf.f32.pop %v645
        %v654 = verf.f32.pop %v646
        %v655 = verf.f32.pop %v647
        %v656 = vadd.f32 %v648, 1.0
        %v657 = vadd.f32 %v649, 1.0
        %v658 = vadd.f32 %v650, 1.0
        %v659 = vadd.f32 %v651, 1.0
        %v660 = vadd.f32 %v652, 1.0
        %v661 = vadd.f32 %v653, 1.0
        %v662 = vadd.f32 %v654, 1.0
        %v663 = vadd.f32 %v655, 1.0
        %v664 = vmul.f32 %v632, %v656
        %v665 = vmul.f32 %v633, %v657
        %v666 = vmul.f32 %v634, %v658
        %v667 = vmul.f32 %v635, %v659
        %v668 = vmul.f32 %v636, %v660
        %v669 = vmul.f32 %v637, %v661
        %v670 = vmul.f32 %v638, %v662
        %v671 = vmul.f32 %v639, %v663
        %v672 = vpack.c.bf16 %v668, %v664
        %v673 = vpack.c.bf16 %v669, %v665
        %v674 = vpack.c.bf16 %v670, %v666
        %v675 = vpack.c.bf16 %v671, %v667
        %v676 = vld [vmem:[#allocation7] sm:$0xf]
        %v677 = vld [vmem:[#allocation7 + $0x4] sm:$0xf]
        %v678 = vld [vmem:[#allocation7 + $0x8] sm:$0xf]
        %v679 = vld [vmem:[#allocation7 + $0xc] sm:$0xf]
        %v680 = vld [vmem:[#allocation7 + $0x10] sm:$0xf]
        %v681 = vld [vmem:[#allocation7 + $0x14] sm:$0xf]
        %v682 = vld [vmem:[#allocation7 + $0x18] sm:$0xf]
        %v683 = vld [vmem:[#allocation7 + $0x1c] sm:$0xf]
        %v684 = vld [vmem:[#allocation7 + $0x20] sm:$0xf]
        %v685 = vld [vmem:[#allocation7 + $0x24] sm:$0xf]
        %v686 = vld [vmem:[#allocation7 + $0x28] sm:$0xf]
        %v687 = vld [vmem:[#allocation7 + $0x2c] sm:$0xf]
        %v688 = vld [vmem:[#allocation7 + $0x30] sm:$0xf]
        %v689 = vld [vmem:[#allocation7 + $0x34] sm:$0xf]
        %v690 = vld [vmem:[#allocation7 + $0x38] sm:$0xf]
        %v691 = vld [vmem:[#allocation7 + $0x3c] sm:$0xf]
        %v692 = vld [vmem:[#allocation7 + $0x40] sm:$0xf]
        %v693 = vld [vmem:[#allocation7 + $0x44] sm:$0xf]
        %v694 = vld [vmem:[#allocation7 + $0x48] sm:$0xf]
        %v695 = vld [vmem:[#allocation7 + $0x4c] sm:$0xf]
        %v696 = vld [vmem:[#allocation7 + $0x50] sm:$0xf]
        %v697 = vld [vmem:[#allocation7 + $0x54] sm:$0xf]
        %v698 = vld [vmem:[#allocation7 + $0x58] sm:$0xf]
        %v699 = vld [vmem:[#allocation7 + $0x5c] sm:$0xf]
        %v700 = vld [vmem:[#allocation7 + $0x60] sm:$0xf]
        %v701 = vld [vmem:[#allocation7 + $0x64] sm:$0xf]
        %v702 = vld [vmem:[#allocation7 + $0x68] sm:$0xf]
        %v703 = vld [vmem:[#allocation7 + $0x6c] sm:$0xf]
        %v704 = vld [vmem:[#allocation7 + $0x70] sm:$0xf]
        %v705 = vld [vmem:[#allocation7 + $0x74] sm:$0xf]
        %v706 = vld [vmem:[#allocation7 + $0x78] sm:$0xf]
        %v707 = vld [vmem:[#allocation7 + $0x7c] sm:$0xf]
        %v708 = vld [vmem:[#allocation7 + $0x80] sm:$0xf]
        %v709 = vld [vmem:[#allocation7 + $0x84] sm:$0xf]
        %v710 = vld [vmem:[#allocation7 + $0x88] sm:$0xf]
        %v711 = vld [vmem:[#allocation7 + $0x8c] sm:$0xf]
        %v712 = vld [vmem:[#allocation7 + $0x90] sm:$0xf]
        %v713 = vld [vmem:[#allocation7 + $0x94] sm:$0xf]
        %v714 = vld [vmem:[#allocation7 + $0x98] sm:$0xf]
        %v715 = vld [vmem:[#allocation7 + $0x9c] sm:$0xf]
        %v716 = vld [vmem:[#allocation7 + $0xa0] sm:$0xf]
        %v717 = vld [vmem:[#allocation7 + $0xa4] sm:$0xf]
        %v718 = vld [vmem:[#allocation7 + $0xa8] sm:$0xf]
        %v719 = vld [vmem:[#allocation7 + $0xac] sm:$0xf]
        %v720 = vld [vmem:[#allocation7 + $0xb0] sm:$0xf]
        %v721 = vld [vmem:[#allocation7 + $0xb4] sm:$0xf]
        %v722 = vld [vmem:[#allocation7 + $0xb8] sm:$0xf]
        %v723 = vld [vmem:[#allocation7 + $0xbc] sm:$0xf]
        %v724 = vld [vmem:[#allocation7 + $0xc0] sm:$0xf]
        %v725 = vld [vmem:[#allocation7 + $0xc4] sm:$0xf]
        %v726 = vld [vmem:[#allocation7 + $0xc8] sm:$0xf]
        %v727 = vld [vmem:[#allocation7 + $0xcc] sm:$0xf]
        %v728 = vld [vmem:[#allocation7 + $0xd0] sm:$0xf]
        %v729 = vld [vmem:[#allocation7 + $0xd4] sm:$0xf]
        %v730 = vld [vmem:[#allocation7 + $0xd8] sm:$0xf]
        %v731 = vld [vmem:[#allocation7 + $0xdc] sm:$0xf]
        %v732 = vld [vmem:[#allocation7 + $0xe0] sm:$0xf]
        %v733 = vld [vmem:[#allocation7 + $0xe4] sm:$0xf]
        %v734 = vld [vmem:[#allocation7 + $0xe8] sm:$0xf]
        %v735 = vld [vmem:[#allocation7 + $0xec] sm:$0xf]
        %v736 = vld [vmem:[#allocation7 + $0xf0] sm:$0xf]
        %v737 = vld [vmem:[#allocation7 + $0xf4] sm:$0xf]
        %v738 = vld [vmem:[#allocation7 + $0xf8] sm:$0xf]
        %v739 = vld [vmem:[#allocation7 + $0xfc] sm:$0xf]
        %v740 = vld [vmem:[%s4] sm:$0x1]
        %v742 = vlaneseq
        %v743 = vshrl.u32 %v742, 7
        %v744 = vsub.s32 0, %v743
        %v745 = vrot.slane %v740, %v744
        %v811 = vunpack.c.l.b16 %v676
        %v812 = vunpack.c.l.b16 %v677
        %v813 = vunpack.c.l.b16 %v678
        %v814 = vunpack.c.l.b16 %v679
        %v815 = vunpack.c.l.b16 %v680
        %v816 = vunpack.c.l.b16 %v681
        %v817 = vunpack.c.l.b16 %v682
        %v818 = vunpack.c.l.b16 %v683
        %v819 = vunpack.c.l.b16 %v684
        %v820 = vunpack.c.l.b16 %v685
        %v821 = vunpack.c.l.b16 %v686
        %v822 = vunpack.c.l.b16 %v687
        %v823 = vunpack.c.l.b16 %v688
        %v824 = vunpack.c.l.b16 %v689
        %v825 = vunpack.c.l.b16 %v690
        %v826 = vunpack.c.l.b16 %v691
        %v827 = vunpack.c.l.b16 %v692
        %v828 = vunpack.c.l.b16 %v693
        %v829 = vunpack.c.l.b16 %v694
        %v830 = vunpack.c.l.b16 %v695
        %v831 = vunpack.c.l.b16 %v696
        %v832 = vunpack.c.l.b16 %v697
        %v833 = vunpack.c.l.b16 %v698
        %v834 = vunpack.c.l.b16 %v699
        %v835 = vunpack.c.l.b16 %v700
        %v836 = vunpack.c.l.b16 %v701
        %v837 = vunpack.c.l.b16 %v702
        %v838 = vunpack.c.l.b16 %v703
        %v839 = vunpack.c.l.b16 %v704
        %v840 = vunpack.c.l.b16 %v705
        %v841 = vunpack.c.l.b16 %v706
        %v842 = vunpack.c.l.b16 %v707
        %v843 = vunpack.c.l.b16 %v708
        %v844 = vunpack.c.l.b16 %v709
        %v845 = vunpack.c.l.b16 %v710
        %v846 = vunpack.c.l.b16 %v711
        %v847 = vunpack.c.l.b16 %v712
        %v848 = vunpack.c.l.b16 %v713
        %v849 = vunpack.c.l.b16 %v714
        %v850 = vunpack.c.l.b16 %v715
        %v851 = vunpack.c.l.b16 %v716
        %v852 = vunpack.c.l.b16 %v717
        %v853 = vunpack.c.l.b16 %v718
        %v854 = vunpack.c.l.b16 %v719
        %v855 = vunpack.c.l.b16 %v720
        %v856 = vunpack.c.l.b16 %v721
        %v857 = vunpack.c.l.b16 %v722
        %v858 = vunpack.c.l.b16 %v723
        %v859 = vunpack.c.l.b16 %v724
        %v860 = vunpack.c.l.b16 %v725
        %v861 = vunpack.c.l.b16 %v726
        %v862 = vunpack.c.l.b16 %v727
        %v863 = vunpack.c.l.b16 %v728
        %v864 = vunpack.c.l.b16 %v729
        %v865 = vunpack.c.l.b16 %v730
        %v866 = vunpack.c.l.b16 %v731
        %v867 = vunpack.c.l.b16 %v732
        %v868 = vunpack.c.l.b16 %v733
        %v869 = vunpack.c.l.b16 %v734
        %v870 = vunpack.c.l.b16 %v735
        %v871 = vunpack.c.l.b16 %v736
        %v872 = vunpack.c.l.b16 %v737
        %v873 = vunpack.c.l.b16 %v738
        %v874 = vunpack.c.l.b16 %v739
        %v875 = vpack.c.b16 %v812, %v811
        %v876 = vpack.c.b16 %v814, %v813
        %v877 = vpack.c.b16 %v816, %v815
        %v878 = vpack.c.b16 %v818, %v817
        %v879 = vpack.c.b16 %v820, %v819
        %v880 = vpack.c.b16 %v822, %v821
        %v881 = vpack.c.b16 %v824, %v823
        %v882 = vpack.c.b16 %v826, %v825
        %v883 = vpack.c.b16 %v828, %v827
        %v884 = vpack.c.b16 %v830, %v829
        %v885 = vpack.c.b16 %v832, %v831
        %v886 = vpack.c.b16 %v834, %v833
        %v887 = vpack.c.b16 %v836, %v835
        %v888 = vpack.c.b16 %v838, %v837
        %v889 = vpack.c.b16 %v840, %v839
        %v890 = vpack.c.b16 %v842, %v841
        %v891 = vpack.c.b16 %v844, %v843
        %v892 = vpack.c.b16 %v846, %v845
        %v893 = vpack.c.b16 %v848, %v847
        %v894 = vpack.c.b16 %v850, %v849
        %v895 = vpack.c.b16 %v852, %v851
        %v896 = vpack.c.b16 %v854, %v853
        %v897 = vpack.c.b16 %v856, %v855
        %v898 = vpack.c.b16 %v858, %v857
        %v899 = vpack.c.b16 %v860, %v859
        %v900 = vpack.c.b16 %v862, %v861
        %v901 = vpack.c.b16 %v864, %v863
        %v902 = vpack.c.b16 %v866, %v865
        %v903 = vpack.c.b16 %v868, %v867
        %v904 = vpack.c.b16 %v870, %v869
        %v905 = vpack.c.b16 %v872, %v871
        %v906 = vpack.c.b16 %v874, %v873
        %939 = vmatprep.subr.bf16.mxu0 0
        %940 = vmatpush1.bf16.msra.mxu0 %v875
        %941 = vmatprep.subr.bf16.mxu0 0
        %942 = vmatpush1.bf16.msra.mxu0 %v876
        %943 = vmatprep.subr.bf16.mxu0 0
        %944 = vmatpush1.bf16.msra.mxu0 %v877
        %945 = vmatprep.subr.bf16.mxu0 0
        %946 = vmatpush1.bf16.msra.mxu0 %v878
        %947 = vmatprep.subr.bf16.mxu0 0
        %948 = vmatpush1.bf16.msra.mxu0 %v879
        %949 = vmatprep.subr.bf16.mxu0 0
        %950 = vmatpush1.bf16.msra.mxu0 %v880
        %951 = vmatprep.subr.bf16.mxu0 0
        %952 = vmatpush1.bf16.msra.mxu0 %v881
        %953 = vmatprep.subr.bf16.mxu0 0
        %954 = vmatpush1.bf16.msra.mxu0 %v882
        %955 = vmatprep.subr.bf16.mxu0 0
        %956 = vmatpush1.bf16.msra.mxu0 %v883
        %957 = vmatprep.subr.bf16.mxu0 0
        %958 = vmatpush1.bf16.msra.mxu0 %v884
        %959 = vmatprep.subr.bf16.mxu0 0
        %960 = vmatpush1.bf16.msra.mxu0 %v885
        %961 = vmatprep.subr.bf16.mxu0 0
        %962 = vmatpush1.bf16.msra.mxu0 %v886
        %963 = vmatprep.subr.bf16.mxu0 0
        %964 = vmatpush1.bf16.msra.mxu0 %v887
        %965 = vmatprep.subr.bf16.mxu0 0
        %966 = vmatpush1.bf16.msra.mxu0 %v888
        %967 = vmatprep.subr.bf16.mxu0 0
        %968 = vmatpush1.bf16.msra.mxu0 %v889
        %969 = vmatprep.subr.bf16.mxu0 0
        %970 = vmatpush1.bf16.msra.mxu0 %v890
        %971 = vmatprep.mubr.bf16.mxu0 %v673
        %972 = vmatmul.mubr.bf16.gmra.mrb[0].mxu0 %v672
        %v973 = vpop.f32.mrb[0].mxu0
        %v974 = vadd.f32 %v745, %v973
        %v975 = vpop.f32.mrb[0].mxu0
        %v976 = vpop.f32.mrb[0].mxu0
        %v977 = vadd.f32 %v745, %v976
        %v978 = vpop.f32.mrb[0].mxu0
        %979 = vdwg.mxu0
        %980 = vmatprep.subr.bf16.mxu0 0
        %981 = vmatpush1.bf16.msra.mxu0 %v891
        %982 = vmatprep.subr.bf16.mxu0 0
        %983 = vmatpush1.bf16.msra.mxu0 %v892
        %984 = vmatprep.subr.bf16.mxu0 0
        %985 = vmatpush1.bf16.msra.mxu0 %v893
        %986 = vmatprep.subr.bf16.mxu0 0
        %987 = vmatpush1.bf16.msra.mxu0 %v894
        %988 = vmatprep.subr.bf16.mxu0 0
        %989 = vmatpush1.bf16.msra.mxu0 %v895
        %990 = vmatprep.subr.bf16.mxu0 0
        %991 = vmatpush1.bf16.msra.mxu0 %v896
        %992 = vmatprep.subr.bf16.mxu0 0
        %993 = vmatpush1.bf16.msra.mxu0 %v897
        %994 = vmatprep.subr.bf16.mxu0 0
        %995 = vmatpush1.bf16.msra.mxu0 %v898
        %996 = vmatprep.subr.bf16.mxu0 0
        %997 = vmatpush1.bf16.msra.mxu0 %v899
        %998 = vmatprep.subr.bf16.mxu0 0
        %999 = vmatpush1.bf16.msra.mxu0 %v900
        %1000 = vmatprep.subr.bf16.mxu0 0
        %1001 = vmatpush1.bf16.msra.mxu0 %v901
        %1002 = vmatprep.subr.bf16.mxu0 0
        %1003 = vmatpush1.bf16.msra.mxu0 %v902
        %1004 = vmatprep.subr.bf16.mxu0 0
        %1005 = vmatpush1.bf16.msra.mxu0 %v903
        %1006 = vmatprep.subr.bf16.mxu0 0
        %1007 = vmatpush1.bf16.msra.mxu0 %v904
        %1008 = vmatprep.subr.bf16.mxu0 0
        %1009 = vmatpush1.bf16.msra.mxu0 %v905
        %1010 = vmatprep.subr.bf16.mxu0 0
        %1011 = vmatpush1.bf16.msra.mxu0 %v906
        %1012 = vmatprep.mubr.bf16.mxu0 %v675
        %1013 = vmatmul.mubr.bf16.gmra.mrb[0].mxu0 %v674
        %v1014 = vpop.f32.mrb[0].mxu0
        %v1015 = vadd.f32 %v974, %v1014
        %v1016 = vpop.f32.mrb[0].mxu0
        %v1017 = vpop.f32.mrb[0].mxu0
        %v1018 = vadd.f32 %v977, %v1017
        %v1019 = vpop.f32.mrb[0].mxu0
        %1020 = vdwg.mxu0
        %v1021 = vadd.f32 %v329, %v1015
        %v1022 = vadd.f32 %v330, %v1018
        %1023 = vadd.xlane.f32.xlu0 %v1021
        %v1024 = vpop.xlane.xlu0 %1023
        %1025 = vadd.xlane.f32.xlu0 %v1022
        %v1026 = vpop.xlane.xlu0 %1025
        %v1027 = vrcp.pop 128.0
        %v1028 = vmul.f32 %v1024, %v1027
        %v1029 = vmul.f32 %v1026, %v1027
        %v1030 = vmul.f32 %v1021, %v1021
        %v1031 = vmul.f32 %v1022, %v1022
        %1032 = vadd.xlane.f32.xlu0 %v1030
        %v1033 = vpop.xlane.xlu0 %1032
        %1034 = vadd.xlane.f32.xlu0 %v1031
        %v1035 = vpop.xlane.xlu0 %1034
        %v1036 = vmul.f32 %v1033, %v1027
        %v1037 = vmul.f32 %v1035, %v1027
        %v1038 = vmul.f32 %v1028, %v1028
        %v1039 = vmul.f32 %v1029, %v1029
        %v1040 = vsub.f32 %v1036, %v1038
        %v1041 = vsub.f32 %v1037, %v1039
        %v1042 = vmax.f32 %v1040, 0.0
        %v1043 = vmax.f32 %v1041, 0.0
        %v1044 = vsub.f32 %v1021, %v1028
        %v1045 = vsub.f32 %v1022, %v1029
        %v1046 = vadd.f32 %v1042, 1e-05
        %v1047 = vadd.f32 %v1043, 1e-05
        %v1048 = vrsqrt.pop %v1046
        %v1049 = vrsqrt.pop %v1047
        %v1050 = vmul.f32 %v1044, %v1048
        %v1051 = vmul.f32 %v1045, %v1049
        %v1052 = vld [vmem:[%s5] sm:$0x1]
        %v1054 = vlaneseq
        %v1055 = vshrl.u32 %v1054, 7
        %v1056 = vsub.s32 0, %v1055
        %v1057 = vrot.slane %v1052, %v1056
        %v1059 = vmul.f32 %v1050, %v1057
        %v1060 = vmul.f32 %v1051, %v1057
        %v1061 = vld [vmem:[%s6] sm:$0x1]
        %v1063 = vlaneseq
        %v1064 = vshrl.u32 %v1063, 7
        %v1065 = vsub.s32 0, %v1064
        %v1066 = vrot.slane %v1061, %v1065
        %v1068 = vadd.f32 %v1059, %v1066
        %v1069 = vadd.f32 %v1060, %v1066
        %1070 = vst [vmem:[%s325] sm:$0xff] %v1068
        %1071 = vst [vmem:[%s325 + $0x8] sm:$0xff] %v1069
        %s1072 = sand.u32 %s185, 1
        %s1073 = scalar_lea.sflag [#allocation4], %s1072
        %s1074 = sand.u32 %s185, 1
        %s1075 = smul.addr %s1074, 16
        %s1076 = scalar_lea.vmem [#allocation8], %s1075
        // Predicated region
        $region61: #{tpu_custom_call.1} parent=47 // pred_check
          %p1077 = pneg %p195
        $region62: #{tpu_custom_call.1} parent=47 // pred_check_branch
          %1079 = sbr.rel (%p1077) target = $region64
        $region63: #{tpu_custom_call.1} parent=47 // pred_region
          %s1080 = smul.u32 2, %s25
          %s1082 = ssub.s32 256, 256
          %1083 = vsyncadd %s1073, %s1082
          %s1084 = smul.addr %s1080, 128
          %s1085 = scalar_lea.hbm %s7, %s1084
          %s1086 = sshll.u32 %s1076, 4
          %s1087 = int_to_ptr.vmem [resolvable:$true] %s1086
          %1092 = dma.vmem_to_hbm [thread:$0]  %s1087, 256, %s1085, %s1073, 128, 128, 8
        $region64: #{tpu_custom_call.1} parent=47 // pred_fallthru
          _
      $region48: #{tpu_custom_call.1} parent=5 // pred_fallthru
        _
      %p1093 = scmp.le.s32.totalorder 2, %s20
      // Predicated region
      $region65: #{tpu_custom_call.1} parent=5 // pred_check
        %p1094 = pneg %p1093
      $region66: #{tpu_custom_call.1} parent=5 // pred_check_branch
        %1096 = sbr.rel (%p1094) target = $region68
      $region67: #{tpu_custom_call.1} parent=5 // pred_region
        %s1097 = ssub.s32 %s20, 2
        // Predicated region
        $region69: #{tpu_custom_call.1} parent=67 // pred_check
          %p1098 = pneg %p201
        $region70: #{tpu_custom_call.1} parent=67 // pred_check_branch
          %1100 = sbr.rel (%p1098) target = $region72
        $region71: #{tpu_custom_call.1} parent=67 // pred_region
          %s1101 = sand.u32 %s186, 1
          %s1102 = scalar_lea.sflag [#allocation4], %s1101
          %s1103 = sand.u32 %s186, 1
          %s1104 = smul.addr %s1103, 16
          %s1105 = scalar_lea.vmem [#allocation8], %s1104
          %1106 = dma.done %s1102, 256
        $region72: #{tpu_custom_call.1} parent=67 // pred_fallthru
          _
      $region68: #{tpu_custom_call.1} parent=5 // pred_fallthru
        _
    $region6: #{tpu_custom_call.1} parent=1 // loop_footer
      %s24 = sadd.s32 1, %s20
    $region7: #{tpu_custom_call.1} parent=1 // loop_footer_branch
      %19 = sbr.rel target = $region3
    $region8: #{tpu_custom_call.1} parent=1 // loop_exit
      _
    %1107 = vsyncpa [#allocation3], 1
    %s1108 = scalar_lea.sflag [#allocation3], 1
    %1109 = vsyncpa %s1108, 1
    %1110 = vsyncpa [#allocation6], 1
    %1111 = vsyncpa [#allocation4], 1
    %s1112 = scalar_lea.sflag [#allocation4], 1
    %1113 = vsyncpa %s1112, 1

// kernel: tpu_custom_call.1
$region0: #{tpu_custom_call.1}
  #allocation0 [shape = 'u32[]', space=smem, size = 0x4, offset = 0x4, fixed_abs, tag = 'smem constant byte address 0x4 - core index']
  #allocation1 [shape = 'u32[144,128]{1,0:T(1,128)}', space=vmem, size = 0x12000, scoped, tag = 'internal scratch']
  %s0 = inlined_call_operand.hbm [shape: f32[32,128], index: 0, kind: input, shape index: {}]
  %s1 = inlined_call_operand.hbm [shape: bf16[128,512], index: 1, kind: input, shape index: {}]
  %s2 = inlined_call_operand.vmem [shape: f32[1,512], index: 2, kind: input, shape index: {}]
  %s3 = inlined_call_operand.hbm [shape: bf16[512,128], index: 3, kind: input, shape index: {}]
  %s4 = inlined_call_operand.vmem [shape: f32[1,128], index: 4, kind: input, shape index: {}]
  %s5 = inlined_call_operand.vmem [shape: f32[1,128], index: 5, kind: input, shape index: {}]
  %s6 = inlined_call_operand.vmem [shape: f32[1,128], index: 6, kind: input, shape index: {}]
  %s7 = inlined_call_operand.hbm [shape: f32[32,128], index: 7, kind: output, shape index: {}]
  %s8 = sld [smem:[#allocation0]]
  $region73: #{tpu_custom_call.1} parent=0
    _
  %s10 = ssub.s32 1, %s8
  %s11 = scalar_select 0, %s10, %s8
  $region1: #{tpu_custom_call.1} parent=0
    #allocation2 [shape = 'u8[16384]{0}', space=vmem, size = 0x4000, scoped, tag = 'input window, operand 0']
    #allocation3 [shape = 's32[2]{0}', space=sflag, size = 0x8, scoped, tag = 'scoped memory for tpu_custom_call.1']
    #allocation4 [shape = 's32[2]{0}', space=sflag, size = 0x8, scoped, tag = 'scoped memory for tpu_custom_call.1']
    #allocation5 [shape = 'u8[131072]{0}', space=vmem, size = 0x20000, scoped, tag = 'input window, operand 1, single buffered']
    #allocation6 [shape = 's32[1]{0}', space=sflag, size = 0x4, scoped, tag = 'scoped memory for tpu_custom_call.1']
    #allocation7 [shape = 'u8[131072]{0}', space=vmem, size = 0x20000, scoped, tag = 'input window, operand 3, single buffered']
    #allocation8 [shape = 'u8[16384]{0}', space=vmem, size = 0x4000, scoped, tag = 'output window, operand 0']
    %12 = vsyncpa [#allocation3], 0
    %s13 = scalar_lea.sflag [#allocation3], 1
    %14 = vsyncpa %s13, 0
    %15 = vsyncpa [#allocation6], 0
    %16 = vsyncpa [#allocation4], 0
    %s17 = scalar_lea.sflag [#allocation4], 1
    %18 = vsyncpa %s17, 0
    loop: start=0, step=1, limit=4
    $region2: #{tpu_custom_call.1} parent=1 // loop_pre_header
      _
    $region3: #{tpu_custom_call.1} parent=1 // loop_header
      %s20 = sphi 0, %s24
      %p21 = scmp.ge.s32.totalorder %s20, 4
      %s30 = sphi 0, %s32
      %s33 = sphi 0, %s30
      %s34 = sphi 0, %s33
      %s50 = sphi 0, %s34
      %s54 = sphi 0, %s54
      %s56 = sphi 0, %s54
      %s57 = sphi 0, %s56
      %s71 = sphi 0, %s57
      %s75 = sphi 0, %s75
      %s77 = sphi 0, %s75
      %s78 = sphi 0, %s77
      %s92 = sphi 0, %s78
      %s96 = sphi 0, %s96
      %s98 = sphi 0, %s96
      %s99 = sphi 0, %s98
      %s113 = sphi 0, %s99
      %s117 = sphi 0, %s117
      %s119 = sphi 0, %s117
      %s120 = sphi 0, %s119
      %s134 = sphi 0, %s120
      %s138 = sphi 0, %s138
      %s140 = sphi 0, %s138
      %s141 = sphi 0, %s140
      %s155 = sphi 0, %s141
      %s159 = sphi 0, %s159
      %s161 = sphi 0, %s159
      %s162 = sphi 0, %s161
      %s176 = sphi 0, %s162
      %s182 = sphi 0, %s184
      %s185 = sphi 0, %s182
      %s186 = sphi 0, %s185
      %s202 = sphi 0, %s186
    $region4: #{tpu_custom_call.1} parent=1 // loop_header_branch
      %23 = sbr.rel (%p21) target = $region8
    $region5: #{tpu_custom_call.1} parent=1 // loop_body
      %s25 = ssub.s32 %s20, 1
      %s26 = ssub.s32 %s20, 2
      %s27 = sadd.s32 %s20, 1
      %s28 = ssub.s32 %s20, %s27
      %p29 = scmp.eq.s32.totalorder %s28, 0
      %s31 = sadd.s32 %s30, 1
      %s32 = scalar_select %p29, %s30, %s31
      %p35 = pneg %p29
      %p36 = scmp.eq.s32.totalorder %s20, 1
      %p37 = por %p35, %p36
      %p38 = scmp.ne.s32.totalorder %s30, %s33
      %p39 = scmp.eq.s32.totalorder %s20, 0
      %p40 = por %p38, %p39
      %p41 = scmp.ne.s32.totalorder %s30, %s33
      %p42 = scmp.eq.s32.totalorder %s25, 1
      %p43 = por %p41, %p42
      %p44 = scmp.ne.s32.totalorder %s33, %s34
      %p45 = scmp.eq.s32.totalorder %s25, 0
      %p46 = por %p44, %p45
      %p47 = scmp.ne.s32.totalorder %s33, %s34
      %p48 = scmp.eq.s32.totalorder %s26, 1
      %p49 = por %p47, %p48
      %p51 = scmp.ne.s32.totalorder %s34, %s50
      %p52 = scmp.eq.s32.totalorder %s26, 0
      %p53 = por %p51, %p52
      %s55 = sadd.s32 %s54, 1
      %p58 = scmp.eq.s32.totalorder %s20, 1
      %p59 = scmp.ne.s32.totalorder %s54, %s56
      %p60 = scmp.eq.s32.totalorder %s20, 0
      %p61 = por %p59, %p60
      %p62 = scmp.ne.s32.totalorder %s54, %s56
      %p63 = scmp.eq.s32.totalorder %s25, 1
      %p64 = por %p62, %p63
      %p65 = scmp.ne.s32.totalorder %s56, %s57
      %p66 = scmp.eq.s32.totalorder %s25, 0
      %p67 = por %p65, %p66
      %p68 = scmp.ne.s32.totalorder %s56, %s57
      %p69 = scmp.eq.s32.totalorder %s26, 1
      %p70 = por %p68, %p69
      %p72 = scmp.ne.s32.totalorder %s57, %s71
      %p73 = scmp.eq.s32.totalorder %s26, 0
      %p74 = por %p72, %p73
      %s76 = sadd.s32 %s75, 1
      %p79 = scmp.eq.s32.totalorder %s20, 1
      %p80 = scmp.ne.s32.totalorder %s75, %s77
      %p81 = scmp.eq.s32.totalorder %s20, 0
      %p82 = por %p80, %p81
      %p83 = scmp.ne.s32.totalorder %s75, %s77
      %p84 = scmp.eq.s32.totalorder %s25, 1
      %p85 = por %p83, %p84
      %p86 = scmp.ne.s32.totalorder %s77, %s78
      %p87 = scmp.eq.s32.totalorder %s25, 0
      %p88 = por %p86, %p87
      %p89 = scmp.ne.s32.totalorder %s77, %s78
      %p90 = scmp.eq.s32.totalorder %s26, 1
      %p91 = por %p89, %p90
      %p93 = scmp.ne.s32.totalorder %s78, %s92
      %p94 = scmp.eq.s32.totalorder %s26, 0
      %p95 = por %p93, %p94
      %s97 = sadd.s32 %s96, 1
      %p100 = scmp.eq.s32.totalorder %s20, 1
      %p101 = scmp.ne.s32.totalorder %s96, %s98
      %p102 = scmp.eq.s32.totalorder %s20, 0
      %p103 = por %p101, %p102
      %p104 = scmp.ne.s32.totalorder %s96, %s98
      %p105 = scmp.eq.s32.totalorder %s25, 1
      %p106 = por %p104, %p105
      %p107 = scmp.ne.s32.totalorder %s98, %s99
      %p108 = scmp.eq.s32.totalorder %s25, 0
      %p109 = por %p107, %p108
      %p110 = scmp.ne.s32.totalorder %s98, %s99
      %p111 = scmp.eq.s32.totalorder %s26, 1
      %p112 = por %p110, %p111
      %p114 = scmp.ne.s32.totalorder %s99, %s113
      %p115 = scmp.eq.s32.totalorder %s26, 0
      %p116 = por %p114, %p115
      %s118 = sadd.s32 %s117, 1
      %p121 = scmp.eq.s32.totalorder %s20, 1
      %p122 = scmp.ne.s32.totalorder %s117, %s119
      %p123 = scmp.eq.s32.totalorder %s20, 0
      %p124 = por %p122, %p123
      %p125 = scmp.ne.s32.totalorder %s117, %s119
      %p126 = scmp.eq.s32.totalorder %s25, 1
      %p127 = por %p125, %p126
      %p128 = scmp.ne.s32.totalorder %s119, %s120
      %p129 = scmp.eq.s32.totalorder %s25, 0
      %p130 = por %p128, %p129
      %p131 = scmp.ne.s32.totalorder %s119, %s120
      %p132 = scmp.eq.s32.totalorder %s26, 1
      %p133 = por %p131, %p132
      %p135 = scmp.ne.s32.totalorder %s120, %s134
      %p136 = scmp.eq.s32.totalorder %s26, 0
      %p137 = por %p135, %p136
      %s139 = sadd.s32 %s138, 1
      %p142 = scmp.eq.s32.totalorder %s20, 1
      %p143 = scmp.ne.s32.totalorder %s138, %s140
      %p144 = scmp.eq.s32.totalorder %s20, 0
      %p145 = por %p143, %p144
      %p146 = scmp.ne.s32.totalorder %s138, %s140
      %p147 = scmp.eq.s32.totalorder %s25, 1
      %p148 = por %p146, %p147
      %p149 = scmp.ne.s32.totalorder %s140, %s141
      %p150 = scmp.eq.s32.totalorder %s25, 0
      %p151 = por %p149, %p150
      %p152 = scmp.ne.s32.totalorder %s140, %s141
      %p153 = scmp.eq.s32.totalorder %s26, 1
      %p154 = por %p152, %p153
      %p156 = scmp.ne.s32.totalorder %s141, %s155
      %p157 = scmp.eq.s32.totalorder %s26, 0
      %p158 = por %p156, %p157
      %s160 = sadd.s32 %s159, 1
      %p163 = scmp.eq.s32.totalorder %s20, 1
      %p164 = scmp.ne.s32.totalorder %s159, %s161
      %p165 = scmp.eq.s32.totalorder %s20, 0
      %p166 = por %p164, %p165
      %p167 = scmp.ne.s32.totalorder %s159, %s161
      %p168 = scmp.eq.s32.totalorder %s25, 1
      %p169 = por %p167, %p168
      %p170 = scmp.ne.s32.totalorder %s161, %s162
      %p171 = scmp.eq.s32.totalorder %s25, 0
      %p172 = por %p170, %p171
      %p173 = scmp.ne.s32.totalorder %s161, %s162
      %p174 = scmp.eq.s32.totalorder %s26, 1
      %p175 = por %p173, %p174
      %p177 = scmp.ne.s32.totalorder %s162, %s176
      %p178 = scmp.eq.s32.totalorder %s26, 0
      %p179 = por %p177, %p178
      %s180 = ssub.s32 %s20, %s27
      %p181 = scmp.eq.s32.totalorder %s180, 0
      %s183 = sadd.s32 %s182, 1
      %s184 = scalar_select %p181, %s182, %s183
      %p187 = pneg %p181
      %p188 = scmp.eq.s32.totalorder %s20, 1
      %p189 = por %p187, %p188
      %p190 = scmp.ne.s32.totalorder %s182, %s185
      %p191 = scmp.eq.s32.totalorder %s20, 0
      %p192 = por %p190, %p191
      %p193 = scmp.ne.s32.totalorder %s182, %s185
      %p194 = scmp.eq.s32.totalorder %s25, 1
      %p195 = por %p193, %p194
      %p196 = scmp.ne.s32.totalorder %s185, %s186
      %p197 = scmp.eq.s32.totalorder %s25, 0
      %p198 = por %p196, %p197
      %p199 = scmp.ne.s32.totalorder %s185, %s186
      %p200 = scmp.eq.s32.totalorder %s26, 1
      %p201 = por %p199, %p200
      %p203 = scmp.ne.s32.totalorder %s186, %s202
      %p204 = scmp.eq.s32.totalorder %s26, 0
      %p205 = por %p203, %p204
      %p206 = scmp.le.s32.totalorder 1, %s20
      %p207 = scmp.lt.s32.totalorder %s20, 3
      %p208 = pnand %p206, %p207
      %p209 = pneg %p208
      // Predicated region
      $region9: #{tpu_custom_call.1} parent=5 // pred_check
        _
      $region10: #{tpu_custom_call.1} parent=5 // pred_check_branch
        %211 = sbr.rel (%p208) target = $region12
      $region11: #{tpu_custom_call.1} parent=5 // pred_region
        %s212 = ssub.s32 %s20, 1
        // Predicated region
        $region13: #{tpu_custom_call.1} parent=11 // pred_check
          %p213 = pneg %p67
        $region14: #{tpu_custom_call.1} parent=11 // pred_check_branch
          %215 = sbr.rel (%p213) target = $region16
        $region15: #{tpu_custom_call.1} parent=11 // pred_region
          %s217 = ssub.s32 4096, 4096
          %218 = vsyncadd [#allocation6], %s217
          %s219 = sshll.u32 [#allocation5], 4
          %s220 = int_to_ptr.vmem [resolvable:$true] %s219
          %225 = dma.hbm_to_vmem [thread:$0]  %s1, 4096, %s220, [#allocation6], 256, 256, 16
        $region16: #{tpu_custom_call.1} parent=11 // pred_fallthru
          _
        // Predicated region
        $region17: #{tpu_custom_call.1} parent=11 // pred_check
          %p226 = pneg %p88
        $region18: #{tpu_custom_call.1} parent=11 // pred_check_branch
          %228 = sbr.rel (%p226) target = $region20
        $region19: #{tpu_custom_call.1} parent=11 // pred_region
          _
        $region20: #{tpu_custom_call.1} parent=11 // pred_fallthru
          _
        // Predicated region
        $region21: #{tpu_custom_call.1} parent=11 // pred_check
          %p229 = pneg %p109
        $region22: #{tpu_custom_call.1} parent=11 // pred_check_branch
          %231 = sbr.rel (%p229) target = $region24
        $region23: #{tpu_custom_call.1} parent=11 // pred_region
          %s233 = ssub.s32 4096, 4096
          %234 = vsyncadd [#allocation6], %s233
          %s235 = sshll.u32 [#allocation7], 4
          %s236 = int_to_ptr.vmem [resolvable:$true] %s235
          %241 = dma.hbm_to_vmem [thread:$0]  %s3, 4096, %s236, [#allocation6], 64, 64, 4
        $region24: #{tpu_custom_call.1} parent=11 // pred_fallthru
          _
        // Predicated region
        $region25: #{tpu_custom_call.1} parent=11 // pred_check
          %p242 = pneg %p130
        $region26: #{tpu_custom_call.1} parent=11 // pred_check_branch
          %244 = sbr.rel (%p242) target = $region28
        $region27: #{tpu_custom_call.1} parent=11 // pred_region
          _
        $region28: #{tpu_custom_call.1} parent=11 // pred_fallthru
          _
        // Predicated region
        $region29: #{tpu_custom_call.1} parent=11 // pred_check
          %p245 = pneg %p151
        $region30: #{tpu_custom_call.1} parent=11 // pred_check_branch
          %247 = sbr.rel (%p245) target = $region32
        $region31: #{tpu_custom_call.1} parent=11 // pred_region
          _
        $region32: #{tpu_custom_call.1} parent=11 // pred_fallthru
          _
        // Predicated region
        $region33: #{tpu_custom_call.1} parent=11 // pred_check
          %p248 = pneg %p172
        $region34: #{tpu_custom_call.1} parent=11 // pred_check_branch
          %250 = sbr.rel (%p248) target = $region36
        $region35: #{tpu_custom_call.1} parent=11 // pred_region
          _
        $region36: #{tpu_custom_call.1} parent=11 // pred_fallthru
          _
      $region12: #{tpu_custom_call.1} parent=5 // pred_fallthru
        _
      %p251 = scmp.lt.s32.totalorder %s20, 2
      // Predicated region
      $region37: #{tpu_custom_call.1} parent=5 // pred_check
        %p252 = pneg %p251
      $region38: #{tpu_custom_call.1} parent=5 // pred_check_branch
        %254 = sbr.rel (%p252) target = $region40
      $region39: #{tpu_custom_call.1} parent=5 // pred_region
        // Predicated region
        $region41: #{tpu_custom_call.1} parent=39 // pred_check
          %p255 = pneg %p40
        $region42: #{tpu_custom_call.1} parent=39 // pred_check_branch
          %257 = sbr.rel (%p255) target = $region44
        $region43: #{tpu_custom_call.1} parent=39 // pred_region
          %s258 = sand.u32 %s30, 1
          %s259 = scalar_lea.sflag [#allocation3], %s258
          %s260 = sand.u32 %s30, 1
          %s261 = smul.addr %s260, 16
          %s262 = scalar_lea.vmem [#allocation2], %s261
          %s263 = smul.u32 2, %s20
          %s265 = ssub.s32 256, 256
          %266 = vsyncadd %s259, %s265
          %s267 = smul.addr %s263, 128
          %s268 = scalar_lea.hbm %s0, %s267
          %s269 = sshll.u32 %s262, 4
          %s270 = int_to_ptr.vmem [resolvable:$true] %s269
          %275 = dma.hbm_to_vmem [thread:$0]  %s268, 256, %s270, %s259, 128, 128, 8
        $region44: #{tpu_custom_call.1} parent=39 // pred_fallthru
          _
      $region40: #{tpu_custom_call.1} parent=5 // pred_fallthru
        _
      %p276 = scmp.le.s32.totalorder 1, %s20
      %p277 = scmp.lt.s32.totalorder %s20, 3
      %p278 = pnand %p276, %p277
      %p279 = pneg %p278
      // Predicated region
      $region45: #{tpu_custom_call.1} parent=5 // pred_check
        _
      $region46: #{tpu_custom_call.1} parent=5 // pred_check_branch
        %281 = sbr.rel (%p278) target = $region48
      $region47: #{tpu_custom_call.1} parent=5 // pred_region
        %s282 = ssub.s32 %s20, 1
        %s283 = sand.u32 %s33, 1
        %s284 = scalar_lea.sflag [#allocation3], %s283
        %s285 = sand.u32 %s33, 1
        %s286 = smul.addr %s285, 16
        %s287 = scalar_lea.vmem [#allocation2], %s286
        // Predicated region
        $region49: #{tpu_custom_call.1} parent=47 // pred_check
          %p288 = pneg %p46
        $region50: #{tpu_custom_call.1} parent=47 // pred_check_branch
          %290 = sbr.rel (%p288) target = $region52
        $region51: #{tpu_custom_call.1} parent=47 // pred_region
          %291 = dma.done %s284, 256
        $region52: #{tpu_custom_call.1} parent=47 // pred_fallthru
          _
        // Predicated region
        $region53: #{tpu_custom_call.1} parent=47 // pred_check
          %p292 = pneg %p67
        $region54: #{tpu_custom_call.1} parent=47 // pred_check_branch
          %294 = sbr.rel (%p292) target = $region56
        $region55: #{tpu_custom_call.1} parent=47 // pred_region
          %295 = dma.done [#allocation6], 4096
        $region56: #{tpu_custom_call.1} parent=47 // pred_fallthru
          _
        // Predicated region
        $region57: #{tpu_custom_call.1} parent=47 // pred_check
          %p296 = pneg %p109
        $region58: #{tpu_custom_call.1} parent=47 // pred_check_branch
          %298 = sbr.rel (%p296) target = $region60
        $region59: #{tpu_custom_call.1} parent=47 // pred_region
          %299 = dma.done [#allocation6], 4096
        $region60: #{tpu_custom_call.1} parent=47 // pred_fallthru
          _
        %s300 = sand.u32 %s33, 1
        %s301 = scalar_lea.sflag [#allocation3], %s300
        %s302 = sand.u32 %s33, 1
        %s303 = smul.addr %s302, 16
        %s304 = scalar_lea.vmem [#allocation2], %s303
        %p305 = pneg %p46
        %p306 = pneg %p43
        %p307 = pneg %p67
        %p308 = pneg %p64
        %p309 = pneg %p88
        %p310 = pneg %p85
        %p311 = pneg %p109
        %p312 = pneg %p106
        %p313 = pneg %p130
        %p314 = pneg %p127
        %p315 = pneg %p151
        %p316 = pneg %p148
        %p317 = pneg %p172
        %p318 = pneg %p169
        %p319 = pneg %p198
        %p320 = pneg %p195
        %s321 = sand.u32 %s185, 1
        %s322 = scalar_lea.sflag [#allocation4], %s321
        %s323 = sand.u32 %s185, 1
        %s324 = smul.addr %s323, 16
        %s325 = scalar_lea.vmem [#allocation8], %s324
        %s326 = smul.u32 2, %s25
        %s327 = smul.u32 2, %s25
        %v329 = vld [vmem:[%s287] sm:$0xff]
        %v330 = vld [vmem:[%s287 + $0x8] sm:$0xff]
        %v331 = vpack.c.bf16 %v330, %v329
        %v332 = vld [vmem:[#allocation5] sm:$0xff]
        %v333 = vld [vmem:[#allocation5 + $0x8] sm:$0xff]
        %v334 = vld [vmem:[#allocation5 + $0x10] sm:$0xff]
        %v335 = vld [vmem:[#allocation5 + $0x18] sm:$0xff]
        %v336 = vld [vmem:[#allocation5 + $0x20] sm:$0xff]
        %v337 = vld [vmem:[#allocation5 + $0x28] sm:$0xff]
        %v338 = vld [vmem:[#allocation5 + $0x30] sm:$0xff]
        %v339 = vld [vmem:[#allocation5 + $0x38] sm:$0xff]
        %v340 = vld [vmem:[#allocation5 + $0x40] sm:$0xff]
        %v341 = vld [vmem:[#allocation5 + $0x48] sm:$0xff]
        %v342 = vld [vmem:[#allocation5 + $0x50] sm:$0xff]
        %v343 = vld [vmem:[#allocation5 + $0x58] sm:$0xff]
        %v344 = vld [vmem:[#allocation5 + $0x60] sm:$0xff]
        %v345 = vld [vmem:[#allocation5 + $0x68] sm:$0xff]
        %v346 = vld [vmem:[#allocation5 + $0x70] sm:$0xff]
        %v347 = vld [vmem:[#allocation5 + $0x78] sm:$0xff]
        %v348 = vld [vmem:[#allocation5 + $0x80] sm:$0xff]
        %v349 = vld [vmem:[#allocation5 + $0x88] sm:$0xff]
        %v350 = vld [vmem:[#allocation5 + $0x90] sm:$0xff]
        %v351 = vld [vmem:[#allocation5 + $0x98] sm:$0xff]
        %v352 = vld [vmem:[#allocation5 + $0xa0] sm:$0xff]
        %v353 = vld [vmem:[#allocation5 + $0xa8] sm:$0xff]
        %v354 = vld [vmem:[#allocation5 + $0xb0] sm:$0xff]
        %v355 = vld [vmem:[#allocation5 + $0xb8] sm:$0xff]
        %v356 = vld [vmem:[#allocation5 + $0xc0] sm:$0xff]
        %v357 = vld [vmem:[#allocation5 + $0xc8] sm:$0xff]
        %v358 = vld [vmem:[#allocation5 + $0xd0] sm:$0xff]
        %v359 = vld [vmem:[#allocation5 + $0xd8] sm:$0xff]
        %v360 = vld [vmem:[#allocation5 + $0xe0] sm:$0xff]
        %v361 = vld [vmem:[#allocation5 + $0xe8] sm:$0xff]
        %v362 = vld [vmem:[#allocation5 + $0xf0] sm:$0xff]
        %v363 = vld [vmem:[#allocation5 + $0xf8] sm:$0xff]
        %v364 = vld [vmem:[%s2] sm:$0xf]
        %v366 = vlaneseq
        %v367 = vshrl.u32 %v366, 7
        %v368 = vsub.s32 0, %v367
        %v369 = vrot.slane %v364, %v368
        %v370 = vlaneseq
        %v371 = vshrl.u32 %v370, 7
        %v372 = vsub.s32 1, %v371
        %v373 = vrot.slane %v364, %v372
        %v374 = vlaneseq
        %v375 = vshrl.u32 %v374, 7
        %v376 = vsub.s32 2, %v375
        %v377 = vrot.slane %v364, %v376
        %v378 = vlaneseq
        %v379 = vshrl.u32 %v378, 7
        %v380 = vsub.s32 3, %v379
        %v381 = vrot.slane %v364, %v380
        %v418 = vunpack.c.l.b16 %v332
        %v419 = vunpack.c.h.b16 %v332
        %v420 = vunpack.c.l.b16 %v333
        %v421 = vunpack.c.h.b16 %v333
        %v422 = vunpack.c.l.b16 %v334
        %v423 = vunpack.c.h.b16 %v334
        %v424 = vunpack.c.l.b16 %v335
        %v425 = vunpack.c.h.b16 %v335
        %v426 = vunpack.c.l.b16 %v336
        %v427 = vunpack.c.h.b16 %v336
        %v428 = vunpack.c.l.b16 %v337
        %v429 = vunpack.c.h.b16 %v337
        %v430 = vunpack.c.l.b16 %v338
        %v431 = vunpack.c.h.b16 %v338
        %v432 = vunpack.c.l.b16 %v339
        %v433 = vunpack.c.h.b16 %v339
        %v434 = vunpack.c.l.b16 %v340
        %v435 = vunpack.c.h.b16 %v340
        %v436 = vunpack.c.l.b16 %v341
        %v437 = vunpack.c.h.b16 %v341
        %v438 = vunpack.c.l.b16 %v342
        %v439 = vunpack.c.h.b16 %v342
        %v440 = vunpack.c.l.b16 %v343
        %v441 = vunpack.c.h.b16 %v343
        %v442 = vunpack.c.l.b16 %v344
        %v443 = vunpack.c.h.b16 %v344
        %v444 = vunpack.c.l.b16 %v345
        %v445 = vunpack.c.h.b16 %v345
        %v446 = vunpack.c.l.b16 %v346
        %v447 = vunpack.c.h.b16 %v346
        %v448 = vunpack.c.l.b16 %v347
        %v449 = vunpack.c.h.b16 %v347
        %v450 = vunpack.c.l.b16 %v348
        %v451 = vunpack.c.h.b16 %v348
        %v452 = vunpack.c.l.b16 %v349
        %v453 = vunpack.c.h.b16 %v349
        %v454 = vunpack.c.l.b16 %v350
        %v455 = vunpack.c.h.b16 %v350
        %v456 = vunpack.c.l.b16 %v351
        %v457 = vunpack.c.h.b16 %v351
        %v458 = vunpack.c.l.b16 %v352
        %v459 = vunpack.c.h.b16 %v352
        %v460 = vunpack.c.l.b16 %v353
        %v461 = vunpack.c.h.b16 %v353
        %v462 = vunpack.c.l.b16 %v354
        %v463 = vunpack.c.h.b16 %v354
        %v464 = vunpack.c.l.b16 %v355
        %v465 = vunpack.c.h.b16 %v355
        %v466 = vunpack.c.l.b16 %v356
        %v467 = vunpack.c.h.b16 %v356
        %v468 = vunpack.c.l.b16 %v357
        %v469 = vunpack.c.h.b16 %v357
        %v470 = vunpack.c.l.b16 %v358
        %v471 = vunpack.c.h.b16 %v358
        %v472 = vunpack.c.l.b16 %v359
        %v473 = vunpack.c.h.b16 %v359
        %v474 = vunpack.c.l.b16 %v360
        %v475 = vunpack.c.h.b16 %v360
        %v476 = vunpack.c.l.b16 %v361
        %v477 = vunpack.c.h.b16 %v361
        %v478 = vunpack.c.l.b16 %v362
        %v479 = vunpack.c.h.b16 %v362
        %v480 = vunpack.c.l.b16 %v363
        %v481 = vunpack.c.h.b16 %v363
        %v482 = vpack.c.b16 %v422, %v418
        %v483 = vpack.c.b16 %v423, %v419
        %v484 = vpack.c.b16 %v424, %v420
        %v485 = vpack.c.b16 %v425, %v421
        %v486 = vpack.c.b16 %v430, %v426
        %v487 = vpack.c.b16 %v431, %v427
        %v488 = vpack.c.b16 %v432, %v428
        %v489 = vpack.c.b16 %v433, %v429
        %v490 = vpack.c.b16 %v438, %v434
        %v491 = vpack.c.b16 %v439, %v435
        %v492 = vpack.c.b16 %v440, %v436
        %v493 = vpack.c.b16 %v441, %v437
        %v494 = vpack.c.b16 %v446, %v442
        %v495 = vpack.c.b16 %v447, %v443
        %v496 = vpack.c.b16 %v448, %v444
        %v497 = vpack.c.b16 %v449, %v445
        %v498 = vpack.c.b16 %v454, %v450
        %v499 = vpack.c.b16 %v455, %v451
        %v500 = vpack.c.b16 %v456, %v452
        %v501 = vpack.c.b16 %v457, %v453
        %v502 = vpack.c.b16 %v462, %v458
        %v503 = vpack.c.b16 %v463, %v459
        %v504 = vpack.c.b16 %v464, %v460
        %v505 = vpack.c.b16 %v465, %v461
        %v506 = vpack.c.b16 %v470, %v466
        %v507 = vpack.c.b16 %v471, %v467
        %v508 = vpack.c.b16 %v472, %v468
        %v509 = vpack.c.b16 %v473, %v469
        %v510 = vpack.c.b16 %v478, %v474
        %v511 = vpack.c.b16 %v479, %v475
        %v512 = vpack.c.b16 %v480, %v476
        %v513 = vpack.c.b16 %v481, %v477
        %546 = vmatprep.subr.bf16.mxu0 %v483
        %547 = vmatpush1.bf16.msra.mxu0 %v482
        %548 = vmatprep.subr.bf16.mxu0 %v487
        %549 = vmatpush1.bf16.msra.mxu0 %v486
        %550 = vmatprep.subr.bf16.mxu0 %v491
        %551 = vmatpush1.bf16.msra.mxu0 %v490
        %552 = vmatprep.subr.bf16.mxu0 %v495
        %553 = vmatpush1.bf16.msra.mxu0 %v494
        %554 = vmatprep.subr.bf16.mxu0 %v499
        %555 = vmatpush1.bf16.msra.mxu0 %v498
        %556 = vmatprep.subr.bf16.mxu0 %v503
        %557 = vmatpush1.bf16.msra.mxu0 %v502
        %558 = vmatprep.subr.bf16.mxu0 %v507
        %559 = vmatpush1.bf16.msra.mxu0 %v506
        %560 = vmatprep.subr.bf16.mxu0 %v511
        %561 = vmatpush1.bf16.msra.mxu0 %v510
        %562 = vmatprep.subr.bf16.mxu0 0
        %563 = vmatpush1.bf16.msra.mxu0 0
        %564 = vmatprep.subr.bf16.mxu0 0
        %565 = vmatpush1.bf16.msra.mxu0 0
        %566 = vmatprep.subr.bf16.mxu0 0
        %567 = vmatpush1.bf16.msra.mxu0 0
        %568 = vmatprep.subr.bf16.mxu0 0
        %569 = vmatpush1.bf16.msra.mxu0 0
        %570 = vmatprep.subr.bf16.mxu0 0
        %571 = vmatpush1.bf16.msra.mxu0 0
        %572 = vmatprep.subr.bf16.mxu0 0
        %573 = vmatpush1.bf16.msra.mxu0 0
        %574 = vmatprep.subr.bf16.mxu0 0
        %575 = vmatpush1.bf16.msra.mxu0 0
        %576 = vmatprep.subr.bf16.mxu0 0
        %577 = vmatpush1.bf16.msra.mxu0 0
        %578 = vmatprep.mubr.bf16.mxu0 0
        %579 = vmatmul.mubr.bf16.gmra.mrb[0].mxu0 %v331
        %v580 = vpop.f32.mrb[0].mxu0
        %v581 = vadd.f32 %v369, %v580
        %v582 = vpop.f32.mrb[0].mxu0
        %v583 = vadd.f32 %v373, %v582
        %v584 = vpop.f32.mrb[0].mxu0
        %v585 = vadd.f32 %v369, %v584
        %v586 = vpop.f32.mrb[0].mxu0
        %v587 = vadd.f32 %v373, %v586
        %588 = vdwg.mxu0
        %589 = vmatprep.subr.bf16.mxu0 %v485
        %590 = vmatpush1.bf16.msra.mxu0 %v484
        %591 = vmatprep.subr.bf16.mxu0 %v489
        %592 = vmatpush1.bf16.msra.mxu0 %v488
        %593 = vmatprep.subr.bf16.mxu0 %v493
        %594 = vmatpush1.bf16.msra.mxu0 %v492
        %595 = vmatprep.subr.bf16.mxu0 %v497
        %596 = vmatpush1.bf16.msra.mxu0 %v496
        %597 = vmatprep.subr.bf16.mxu0 %v501
        %598 = vmatpush1.bf16.msra.mxu0 %v500
        %599 = vmatprep.subr.bf16.mxu0 %v505
        %600 = vmatpush1.bf16.msra.mxu0 %v504
        %601 = vmatprep.subr.bf16.mxu0 %v509
        %602 = vmatpush1.bf16.msra.mxu0 %v508
        %603 = vmatprep.subr.bf16.mxu0 %v513
        %604 = vmatpush1.bf16.msra.mxu0 %v512
        %605 = vmatprep.subr.bf16.mxu0 0
        %606 = vmatpush1.bf16.msra.mxu0 0
        %607 = vmatprep.subr.bf16.mxu0 0
        %608 = vmatpush1.bf16.msra.mxu0 0
        %609 = vmatprep.subr.bf16.mxu0 0
        %610 = vmatpush1.bf16.msra.mxu0 0
        %611 = vmatprep.subr.bf16.mxu0 0
        %612 = vmatpush1.bf16.msra.mxu0 0
        %613 = vmatprep.subr.bf16.mxu0 0
        %614 = vmatpush1.bf16.msra.mxu0 0
        %615 = vmatprep.subr.bf16.mxu0 0
        %616 = vmatpush1.bf16.msra.mxu0 0
        %617 = vmatprep.subr.bf16.mxu0 0
        %618 = vmatpush1.bf16.msra.mxu0 0
        %619 = vmatprep.subr.bf16.mxu0 0
        %620 = vmatpush1.bf16.msra.mxu0 0
        %621 = vmatprep.mubr.bf16.mxu0 0
        %622 = vmatmul.mubr.bf16.gmra.mrb[0].mxu0 %v331
        %v623 = vpop.f32.mrb[0].mxu0
        %v624 = vadd.f32 %v377, %v623
        %v625 = vpop.f32.mrb[0].mxu0
        %v626 = vadd.f32 %v381, %v625
        %v627 = vpop.f32.mrb[0].mxu0
        %v628 = vadd.f32 %v377, %v627
        %v629 = vpop.f32.mrb[0].mxu0
        %v630 = vadd.f32 %v381, %v629
        %631 = vdwg.mxu0
        %v632 = vmul.f32 %v581, 0.5
        %v633 = vmul.f32 %v583, 0.5
        %v634 = vmul.f32 %v624, 0.5
        %v635 = vmul.f32 %v626, 0.5
        %v636 = vmul.f32 %v585, 0.5
        %v637 = vmul.f32 %v587, 0.5
        %v638 = vmul.f32 %v628, 0.5
        %v639 = vmul.f32 %v630, 0.5
        %v640 = vmul.f32 %v581, 0.70710677
        %v641 = vmul.f32 %v583, 0.70710677
        %v642 = vmul.f32 %v624, 0.70710677
        %v643 = vmul.f32 %v626, 0.70710677
        %v644 = vmul.f32 %v585, 0.70710677
        %v645 = vmul.f32 %v587, 0.70710677
        %v646 = vmul.f32 %v628, 0.70710677
        %v647 = vmul.f32 %v630, 0.70710677
        %v648 = verf.f32.pop %v640
        %v649 = verf.f32.pop %v641
        %v650 = verf.f32.pop %v642
        %v651 = verf.f32.pop %v643
        %v652 = verf.f32.pop %v644
        %v653 = verf.f32.pop %v645
        %v654 = verf.f32.pop %v646
        %v655 = verf.f32.pop %v647
        %v656 = vadd.f32 %v648, 1.0
        %v657 = vadd.f32 %v649, 1.0
        %v658 = vadd.f32 %v650, 1.0
        %v659 = vadd.f32 %v651, 1.0
        %v660 = vadd.f32 %v652, 1.0
        %v661 = vadd.f32 %v653, 1.0
        %v662 = vadd.f32 %v654, 1.0
        %v663 = vadd.f32 %v655, 1.0
        %v664 = vmul.f32 %v632, %v656
        %v665 = vmul.f32 %v633, %v657
        %v666 = vmul.f32 %v634, %v658
        %v667 = vmul.f32 %v635, %v659
        %v668 = vmul.f32 %v636, %v660
        %v669 = vmul.f32 %v637, %v661
        %v670 = vmul.f32 %v638, %v662
        %v671 = vmul.f32 %v639, %v663
        %v672 = vpack.c.bf16 %v668, %v664
        %v673 = vpack.c.bf16 %v669, %v665
        %v674 = vpack.c.bf16 %v670, %v666
        %v675 = vpack.c.bf16 %v671, %v667
        %v676 = vld [vmem:[#allocation7] sm:$0xf]
        %v677 = vld [vmem:[#allocation7 + $0x4] sm:$0xf]
        %v678 = vld [vmem:[#allocation7 + $0x8] sm:$0xf]
        %v679 = vld [vmem:[#allocation7 + $0xc] sm:$0xf]
        %v680 = vld [vmem:[#allocation7 + $0x10] sm:$0xf]
        %v681 = vld [vmem:[#allocation7 + $0x14] sm:$0xf]
        %v682 = vld [vmem:[#allocation7 + $0x18] sm:$0xf]
        %v683 = vld [vmem:[#allocation7 + $0x1c] sm:$0xf]
        %v684 = vld [vmem:[#allocation7 + $0x20] sm:$0xf]
        %v685 = vld [vmem:[#allocation7 + $0x24] sm:$0xf]
        %v686 = vld [vmem:[#allocation7 + $0x28] sm:$0xf]
        %v687 = vld [vmem:[#allocation7 + $0x2c] sm:$0xf]
        %v688 = vld [vmem:[#allocation7 + $0x30] sm:$0xf]
        %v689 = vld [vmem:[#allocation7 + $0x34] sm:$0xf]
        %v690 = vld [vmem:[#allocation7 + $0x38] sm:$0xf]
        %v691 = vld [vmem:[#allocation7 + $0x3c] sm:$0xf]
        %v692 = vld [vmem:[#allocation7 + $0x40] sm:$0xf]
        %v693 = vld [vmem:[#allocation7 + $0x44] sm:$0xf]
        %v694 = vld [vmem:[#allocation7 + $0x48] sm:$0xf]
        %v695 = vld [vmem:[#allocation7 + $0x4c] sm:$0xf]
        %v696 = vld [vmem:[#allocation7 + $0x50] sm:$0xf]
        %v697 = vld [vmem:[#allocation7 + $0x54] sm:$0xf]
        %v698 = vld [vmem:[#allocation7 + $0x58] sm:$0xf]
        %v699 = vld [vmem:[#allocation7 + $0x5c] sm:$0xf]
        %v700 = vld [vmem:[#allocation7 + $0x60] sm:$0xf]
        %v701 = vld [vmem:[#allocation7 + $0x64] sm:$0xf]
        %v702 = vld [vmem:[#allocation7 + $0x68] sm:$0xf]
        %v703 = vld [vmem:[#allocation7 + $0x6c] sm:$0xf]
        %v704 = vld [vmem:[#allocation7 + $0x70] sm:$0xf]
        %v705 = vld [vmem:[#allocation7 + $0x74] sm:$0xf]
        %v706 = vld [vmem:[#allocation7 + $0x78] sm:$0xf]
        %v707 = vld [vmem:[#allocation7 + $0x7c] sm:$0xf]
        %v708 = vld [vmem:[#allocation7 + $0x80] sm:$0xf]
        %v709 = vld [vmem:[#allocation7 + $0x84] sm:$0xf]
        %v710 = vld [vmem:[#allocation7 + $0x88] sm:$0xf]
        %v711 = vld [vmem:[#allocation7 + $0x8c] sm:$0xf]
        %v712 = vld [vmem:[#allocation7 + $0x90] sm:$0xf]
        %v713 = vld [vmem:[#allocation7 + $0x94] sm:$0xf]
        %v714 = vld [vmem:[#allocation7 + $0x98] sm:$0xf]
        %v715 = vld [vmem:[#allocation7 + $0x9c] sm:$0xf]
        %v716 = vld [vmem:[#allocation7 + $0xa0] sm:$0xf]
        %v717 = vld [vmem:[#allocation7 + $0xa4] sm:$0xf]
        %v718 = vld [vmem:[#allocation7 + $0xa8] sm:$0xf]
        %v719 = vld [vmem:[#allocation7 + $0xac] sm:$0xf]
        %v720 = vld [vmem:[#allocation7 + $0xb0] sm:$0xf]
        %v721 = vld [vmem:[#allocation7 + $0xb4] sm:$0xf]
        %v722 = vld [vmem:[#allocation7 + $0xb8] sm:$0xf]
        %v723 = vld [vmem:[#allocation7 + $0xbc] sm:$0xf]
        %v724 = vld [vmem:[#allocation7 + $0xc0] sm:$0xf]
        %v725 = vld [vmem:[#allocation7 + $0xc4] sm:$0xf]
        %v726 = vld [vmem:[#allocation7 + $0xc8] sm:$0xf]
        %v727 = vld [vmem:[#allocation7 + $0xcc] sm:$0xf]
        %v728 = vld [vmem:[#allocation7 + $0xd0] sm:$0xf]
        %v729 = vld [vmem:[#allocation7 + $0xd4] sm:$0xf]
        %v730 = vld [vmem:[#allocation7 + $0xd8] sm:$0xf]
        %v731 = vld [vmem:[#allocation7 + $0xdc] sm:$0xf]
        %v732 = vld [vmem:[#allocation7 + $0xe0] sm:$0xf]
        %v733 = vld [vmem:[#allocation7 + $0xe4] sm:$0xf]
        %v734 = vld [vmem:[#allocation7 + $0xe8] sm:$0xf]
        %v735 = vld [vmem:[#allocation7 + $0xec] sm:$0xf]
        %v736 = vld [vmem:[#allocation7 + $0xf0] sm:$0xf]
        %v737 = vld [vmem:[#allocation7 + $0xf4] sm:$0xf]
        %v738 = vld [vmem:[#allocation7 + $0xf8] sm:$0xf]
        %v739 = vld [vmem:[#allocation7 + $0xfc] sm:$0xf]
        %v740 = vld [vmem:[%s4] sm:$0x1]
        %v742 = vlaneseq
        %v743 = vshrl.u32 %v742, 7
        %v744 = vsub.s32 0, %v743
        %v745 = vrot.slane %v740, %v744
        %v811 = vunpack.c.l.b16 %v676
        %v812 = vunpack.c.l.b16 %v677
        %v813 = vunpack.c.l.b16 %v678
        %v814 = vunpack.c.l.b16 %v679
        %v815 = vunpack.c.l.b16 %v680
        %v816 = vunpack.c.l.b16 %v681
        %v817 = vunpack.c.l.b16 %v682
        %v818 = vunpack.c.l.b16 %v683
        %v819 = vunpack.c.l.b16 %v684
        %v820 = vunpack.c.l.b16 %v685
        %v821 = vunpack.c.l.b16 %v686
        %v822 = vunpack.c.l.b16 %v687
        %v823 = vunpack.c.l.b16 %v688
        %v824 = vunpack.c.l.b16 %v689
        %v825 = vunpack.c.l.b16 %v690
        %v826 = vunpack.c.l.b16 %v691
        %v827 = vunpack.c.l.b16 %v692
        %v828 = vunpack.c.l.b16 %v693
        %v829 = vunpack.c.l.b16 %v694
        %v830 = vunpack.c.l.b16 %v695
        %v831 = vunpack.c.l.b16 %v696
        %v832 = vunpack.c.l.b16 %v697
        %v833 = vunpack.c.l.b16 %v698
        %v834 = vunpack.c.l.b16 %v699
        %v835 = vunpack.c.l.b16 %v700
        %v836 = vunpack.c.l.b16 %v701
        %v837 = vunpack.c.l.b16 %v702
        %v838 = vunpack.c.l.b16 %v703
        %v839 = vunpack.c.l.b16 %v704
        %v840 = vunpack.c.l.b16 %v705
        %v841 = vunpack.c.l.b16 %v706
        %v842 = vunpack.c.l.b16 %v707
        %v843 = vunpack.c.l.b16 %v708
        %v844 = vunpack.c.l.b16 %v709
        %v845 = vunpack.c.l.b16 %v710
        %v846 = vunpack.c.l.b16 %v711
        %v847 = vunpack.c.l.b16 %v712
        %v848 = vunpack.c.l.b16 %v713
        %v849 = vunpack.c.l.b16 %v714
        %v850 = vunpack.c.l.b16 %v715
        %v851 = vunpack.c.l.b16 %v716
        %v852 = vunpack.c.l.b16 %v717
        %v853 = vunpack.c.l.b16 %v718
        %v854 = vunpack.c.l.b16 %v719
        %v855 = vunpack.c.l.b16 %v720
        %v856 = vunpack.c.l.b16 %v721
        %v857 = vunpack.c.l.b16 %v722
        %v858 = vunpack.c.l.b16 %v723
        %v859 = vunpack.c.l.b16 %v724
        %v860 = vunpack.c.l.b16 %v725
        %v861 = vunpack.c.l.b16 %v726
        %v862 = vunpack.c.l.b16 %v727
        %v863 = vunpack.c.l.b16 %v728
        %v864 = vunpack.c.l.b16 %v729
        %v865 = vunpack.c.l.b16 %v730
        %v866 = vunpack.c.l.b16 %v731
        %v867 = vunpack.c.l.b16 %v732
        %v868 = vunpack.c.l.b16 %v733
        %v869 = vunpack.c.l.b16 %v734
        %v870 = vunpack.c.l.b16 %v735
        %v871 = vunpack.c.l.b16 %v736
        %v872 = vunpack.c.l.b16 %v737
        %v873 = vunpack.c.l.b16 %v738
        %v874 = vunpack.c.l.b16 %v739
        %v875 = vpack.c.b16 %v812, %v811
        %v876 = vpack.c.b16 %v814, %v813
        %v877 = vpack.c.b16 %v816, %v815
        %v878 = vpack.c.b16 %v818, %v817
        %v879 = vpack.c.b16 %v820, %v819
        %v880 = vpack.c.b16 %v822, %v821
        %v881 = vpack.c.b16 %v824, %v823
        %v882 = vpack.c.b16 %v826, %v825
        %v883 = vpack.c.b16 %v828, %v827
        %v884 = vpack.c.b16 %v830, %v829
        %v885 = vpack.c.b16 %v832, %v831
        %v886 = vpack.c.b16 %v834, %v833
        %v887 = vpack.c.b16 %v836, %v835
        %v888 = vpack.c.b16 %v838, %v837
        %v889 = vpack.c.b16 %v840, %v839
        %v890 = vpack.c.b16 %v842, %v841
        %v891 = vpack.c.b16 %v844, %v843
        %v892 = vpack.c.b16 %v846, %v845
        %v893 = vpack.c.b16 %v848, %v847
        %v894 = vpack.c.b16 %v850, %v849
        %v895 = vpack.c.b16 %v852, %v851
        %v896 = vpack.c.b16 %v854, %v853
        %v897 = vpack.c.b16 %v856, %v855
        %v898 = vpack.c.b16 %v858, %v857
        %v899 = vpack.c.b16 %v860, %v859
        %v900 = vpack.c.b16 %v862, %v861
        %v901 = vpack.c.b16 %v864, %v863
        %v902 = vpack.c.b16 %v866, %v865
        %v903 = vpack.c.b16 %v868, %v867
        %v904 = vpack.c.b16 %v870, %v869
        %v905 = vpack.c.b16 %v872, %v871
        %v906 = vpack.c.b16 %v874, %v873
        %939 = vmatprep.subr.bf16.mxu0 0
        %940 = vmatpush1.bf16.msra.mxu0 %v875
        %941 = vmatprep.subr.bf16.mxu0 0
        %942 = vmatpush1.bf16.msra.mxu0 %v876
        %943 = vmatprep.subr.bf16.mxu0 0
        %944 = vmatpush1.bf16.msra.mxu0 %v877
        %945 = vmatprep.subr.bf16.mxu0 0
        %946 = vmatpush1.bf16.msra.mxu0 %v878
        %947 = vmatprep.subr.bf16.mxu0 0
        %948 = vmatpush1.bf16.msra.mxu0 %v879
        %949 = vmatprep.subr.bf16.mxu0 0
        %950 = vmatpush1.bf16.msra.mxu0 %v880
        %951 = vmatprep.subr.bf16.mxu0 0
        %952 = vmatpush1.bf16.msra.mxu0 %v881
        %953 = vmatprep.subr.bf16.mxu0 0
        %954 = vmatpush1.bf16.msra.mxu0 %v882
        %955 = vmatprep.subr.bf16.mxu0 0
        %956 = vmatpush1.bf16.msra.mxu0 %v883
        %957 = vmatprep.subr.bf16.mxu0 0
        %958 = vmatpush1.bf16.msra.mxu0 %v884
        %959 = vmatprep.subr.bf16.mxu0 0
        %960 = vmatpush1.bf16.msra.mxu0 %v885
        %961 = vmatprep.subr.bf16.mxu0 0
        %962 = vmatpush1.bf16.msra.mxu0 %v886
        %963 = vmatprep.subr.bf16.mxu0 0
        %964 = vmatpush1.bf16.msra.mxu0 %v887
        %965 = vmatprep.subr.bf16.mxu0 0
        %966 = vmatpush1.bf16.msra.mxu0 %v888
        %967 = vmatprep.subr.bf16.mxu0 0
        %968 = vmatpush1.bf16.msra.mxu0 %v889
        %969 = vmatprep.subr.bf16.mxu0 0
        %970 = vmatpush1.bf16.msra.mxu0 %v890
        %971 = vmatprep.mubr.bf16.mxu0 %v673
        %972 = vmatmul.mubr.bf16.gmra.mrb[0].mxu0 %v672
        %v973 = vpop.f32.mrb[0].mxu0
        %v974 = vadd.f32 %v745, %v973
        %v975 = vpop.f32.mrb[0].mxu0
        %v976 = vpop.f32.mrb[0].mxu0
        %v977 = vadd.f32 %v745, %v976
        %v978 = vpop.f32.mrb[0].mxu0
        %979 = vdwg.mxu0
        %980 = vmatprep.subr.bf16.mxu0 0
        %981 = vmatpush1.bf16.msra.mxu0 %v891
        %982 = vmatprep.subr.bf16.mxu0 0
        %983 = vmatpush1.bf16.msra.mxu0 %v892
        %984 = vmatprep.subr.bf16.mxu0 0
        %985 = vmatpush1.bf16.msra.mxu0 %v893
        %986 = vmatprep.subr.bf16.mxu0 0
        %987 = vmatpush1.bf16.msra.mxu0 %v894
        %988 = vmatprep.subr.bf16.mxu0 0
        %989 = vmatpush1.bf16.msra.mxu0 %v895
        %990 = vmatprep.subr.bf16.mxu0 0
        %991 = vmatpush1.bf16.msra.mxu0 %v896
        %992 = vmatprep.subr.bf16.mxu0 0
        %993 = vmatpush1.bf16.msra.mxu0 %v897
        %994 = vmatprep.subr.bf16.mxu0 0
        %995 = vmatpush1.bf16.msra.mxu0 %v898
        %996 = vmatprep.subr.bf16.mxu0 0
        %997 = vmatpush1.bf16.msra.mxu0 %v899
        %998 = vmatprep.subr.bf16.mxu0 0
        %999 = vmatpush1.bf16.msra.mxu0 %v900
        %1000 = vmatprep.subr.bf16.mxu0 0
        %1001 = vmatpush1.bf16.msra.mxu0 %v901
        %1002 = vmatprep.subr.bf16.mxu0 0
        %1003 = vmatpush1.bf16.msra.mxu0 %v902
        %1004 = vmatprep.subr.bf16.mxu0 0
        %1005 = vmatpush1.bf16.msra.mxu0 %v903
        %1006 = vmatprep.subr.bf16.mxu0 0
        %1007 = vmatpush1.bf16.msra.mxu0 %v904
        %1008 = vmatprep.subr.bf16.mxu0 0
        %1009 = vmatpush1.bf16.msra.mxu0 %v905
        %1010 = vmatprep.subr.bf16.mxu0 0
        %1011 = vmatpush1.bf16.msra.mxu0 %v906
        %1012 = vmatprep.mubr.bf16.mxu0 %v675
        %1013 = vmatmul.mubr.bf16.gmra.mrb[0].mxu0 %v674
        %v1014 = vpop.f32.mrb[0].mxu0
        %v1015 = vadd.f32 %v974, %v1014
        %v1016 = vpop.f32.mrb[0].mxu0
        %v1017 = vpop.f32.mrb[0].mxu0
        %v1018 = vadd.f32 %v977, %v1017
        %v1019 = vpop.f32.mrb[0].mxu0
        %1020 = vdwg.mxu0
        %v1021 = vadd.f32 %v329, %v1015
        %v1022 = vadd.f32 %v330, %v1018
        %1023 = vadd.xlane.f32.xlu0 %v1021
        %v1024 = vpop.xlane.xlu0 %1023
        %1025 = vadd.xlane.f32.xlu0 %v1022
        %v1026 = vpop.xlane.xlu0 %1025
        %v1027 = vrcp.pop 128.0
        %v1028 = vmul.f32 %v1024, %v1027
        %v1029 = vmul.f32 %v1026, %v1027
        %v1030 = vmul.f32 %v1021, %v1021
        %v1031 = vmul.f32 %v1022, %v1022
        %1032 = vadd.xlane.f32.xlu0 %v1030
        %v1033 = vpop.xlane.xlu0 %1032
        %1034 = vadd.xlane.f32.xlu0 %v1031
        %v1035 = vpop.xlane.xlu0 %1034
        %v1036 = vmul.f32 %v1033, %v1027
        %v1037 = vmul.f32 %v1035, %v1027
        %v1038 = vmul.f32 %v1028, %v1028
        %v1039 = vmul.f32 %v1029, %v1029
        %v1040 = vsub.f32 %v1036, %v1038
        %v1041 = vsub.f32 %v1037, %v1039
        %v1042 = vmax.f32 %v1040, 0.0
        %v1043 = vmax.f32 %v1041, 0.0
        %v1044 = vsub.f32 %v1021, %v1028
        %v1045 = vsub.f32 %v1022, %v1029
        %v1046 = vadd.f32 %v1042, 1e-05
        %v1047 = vadd.f32 %v1043, 1e-05
        %v1048 = vrsqrt.pop %v1046
        %v1049 = vrsqrt.pop %v1047
        %v1050 = vmul.f32 %v1044, %v1048
        %v1051 = vmul.f32 %v1045, %v1049
        %v1052 = vld [vmem:[%s5] sm:$0x1]
        %v1054 = vlaneseq
        %v1055 = vshrl.u32 %v1054, 7
        %v1056 = vsub.s32 0, %v1055
        %v1057 = vrot.slane %v1052, %v1056
        %v1059 = vmul.f32 %v1050, %v1057
        %v1060 = vmul.f32 %v1051, %v1057
        %v1061 = vld [vmem:[%s6] sm:$0x1]
        %v1063 = vlaneseq
        %v1064 = vshrl.u32 %v1063, 7
        %v1065 = vsub.s32 0, %v1064
        %v1066 = vrot.slane %v1061, %v1065
        %v1068 = vadd.f32 %v1059, %v1066
        %v1069 = vadd.f32 %v1060, %v1066
        %1070 = vst [vmem:[%s325] sm:$0xff] %v1068
        %1071 = vst [vmem:[%s325 + $0x8] sm:$0xff] %v1069
        %s1072 = sand.u32 %s185, 1
        %s1073 = scalar_lea.sflag [#allocation4], %s1072
        %s1074 = sand.u32 %s185, 1
        %s1075 = smul.addr %s1074, 16
        %s1076 = scalar_lea.vmem [#allocation8], %s1075
        // Predicated region
        $region61: #{tpu_custom_call.1} parent=47 // pred_check
          %p1077 = pneg %p195
        $region62: #{tpu_custom_call.1} parent=47 // pred_check_branch
          %1079 = sbr.rel (%p1077) target = $region64
        $region63: #{tpu_custom_call.1} parent=47 // pred_region
          %s1080 = smul.u32 2, %s25
          %s1082 = ssub.s32 256, 256
          %1083 = vsyncadd %s1073, %s1082
          %s1084 = smul.addr %s1080, 128
          %s1085 = scalar_lea.hbm %s7, %s1084
          %s1086 = sshll.u32 %s1076, 4
          %s1087 = int_to_ptr.vmem [resolvable:$true] %s1086
          %1092 = dma.vmem_to_hbm [thread:$0]  %s1087, 256, %s1085, %s1073, 128, 128, 8
        $region64: #{tpu_custom_call.1} parent=47 // pred_fallthru
          _
      $region48: #{tpu_custom_call.1} parent=5 // pred_fallthru
        _
      %p1093 = scmp.le.s32.totalorder 2, %s20
      // Predicated region
      $region65: #{tpu_custom_call.1} parent=5 // pred_check
        %p1094 = pneg %p1093
      $region66: #{tpu_custom_call.1} parent=5 // pred_check_branch
        %1096 = sbr.rel (%p1094) target = $region68
      $region67: #{tpu_custom_call.1} parent=5 // pred_region
        %s1097 = ssub.s32 %s20, 2
        // Predicated region
        $region69: #{tpu_custom_call.1} parent=67 // pred_check
          %p1098 = pneg %p201
        $region70: #{tpu_custom_call.1} parent=67 // pred_check_branch
          %1100 = sbr.rel (%p1098) target = $region72
        $region71: #{tpu_custom_call.1} parent=67 // pred_region
          %s1101 = sand.u32 %s186, 1
          %s1102 = scalar_lea.sflag [#allocation4], %s1101
          %s1103 = sand.u32 %s186, 1
          %s1104 = smul.addr %s1103, 16
          %s1105 = scalar_lea.vmem [#allocation8], %s1104
          %1106 = dma.done %s1102, 256
        $region72: #{tpu_custom_call.1} parent=67 // pred_fallthru
          _
      $region68: #{tpu_custom_call.1} parent=5 // pred_fallthru
        _
    $region6: #{tpu_custom_call.1} parent=1 // loop_footer
      %s24 = sadd.s32 1, %s20
    $region7: #{tpu_custom_call.1} parent=1 // loop_footer_branch
      %19 = sbr.rel target = $region3
    $region8: #{tpu_custom_call.1} parent=1 // loop_exit
      _
    %1107 = vsyncpa [#allocation3], 1
    %s1108 = scalar_lea.sflag [#allocation3], 1
    %1109 = vsyncpa %s1108, 1
    %1110 = vsyncpa [#allocation6], 1
    %1111 = vsyncpa [#allocation4], 1
    %s1112 = scalar_lea.sflag [#allocation4], 1
    %1113 = vsyncpa %s1112, 1

</llo_original>
